<compile_context>
chip_gen: v7x
topology: tpu7x:2x2x1
jax: 0.10.0
libtpu: 0.0.40
codegen_flags: <defaults>
</compile_context>

<pallas_src>
import jax
import jax.numpy as jnp
from jax import lax
from jax.experimental import pallas as pl
from jax.experimental.pallas import tpu as pltpu


KH = KW = 3  # 3x3 conv, stride 1, padding 1


def _shift_flat(x, d):
    """Linear (non-circular) shift along the flattened H*W lane axis.

    y[:, p] = x[:, p + d] if 0 <= p + d < HW else 0.
    """
    if d == 0:
        return x
    hw = x.shape[-1]
    fill = jnp.zeros((x.shape[0], abs(d)), dtype=x.dtype)
    if d > 0:
        return jnp.concatenate([x[:, d:], fill], axis=-1)
    return jnp.concatenate([fill, x[:, :hw + d]], axis=-1)


def _make_conv_kernel(H, W, Cin, Cout, nblk):
    """Kernel processing `nblk` NCHW images (flattened H*W) per grid step."""
    HW = H * W
    # taps ordered (kh, kw) row-major to match the weight matrix layout.
    taps = [(kh - 1, kw - 1) for kh in range(KH) for kw in range(KW)]

    def kernel(x_ref, a_ref, b_ref, o_ref, p_ref):
        # x_ref: (nblk, Cin, HW)   input images, channels-first, lane-dense
        # a_ref: (Cout, 9*Cin)     folded conv weights (VMEM-resident)
        # b_ref: (Cout, 1)         bias
        # o_ref: (nblk, Cout, HW)  output images, channels-first, lane-dense
        # p_ref: (9*Cin, HW)       VMEM scratch: im2col slab for one image
        col = lax.broadcasted_iota(jnp.int32, (Cin, HW), 1) % W
        mask_l = col >= 1        # tap reads the pixel to the left  (dw == -1)
        mask_r = col <= W - 2    # tap reads the pixel to the right (dw == +1)

        a = a_ref[...]           # hoisted: loaded once per grid step
        b = b_ref[...]

        for n in range(nblk):
            x_img = x_ref[n]                                  # (Cin, HW)
            # Build the (9*Cin, HW) im2col slab: vertical shifts fall off the
            # flat buffer (zero fill == zero padding in H), horizontal wraps at
            # row boundaries are killed by the column masks (zero padding in W).
            for t, (dh, dw) in enumerate(taps):
                piece = _shift_flat(x_img, dh * W + dw)
                if dw == -1:
                    piece = jnp.where(mask_l, piece, 0.0)
                elif dw == 1:
                    piece = jnp.where(mask_r, piece, 0.0)
                p_ref[t * Cin:(t + 1) * Cin, :] = piece
            # Single K = 9*Cin contraction on the MXU, f32 accumulation.
            # (On v6e/v7x, casting `a` and the slab to bf16 here — keeping the
            # f32 accumulator via preferred_element_type — halves VMEM/HBM
            # bytes and doubles MXU rate; kept f32 for a strict 1e-4 check.)
            out = jnp.dot(a, p_ref[...], preferred_element_type=jnp.float32)
            o_ref[n] = (out + b).astype(o_ref.dtype)          # (Cout, HW) store

    return kernel


def conv3x3_pallas(x_flat, a_mat, bias, H, W):
    """x_flat: (N, Cin, H*W) NCHW-flattened -> (N, Cout, H*W)."""
    N, Cin, HW = x_flat.shape
    Cout, K = a_mat.shape
    assert K == KH * KW * Cin and HW == H * W

    # >=2 grid steps on a "parallel" axis (v7x megacore) while amortizing the
    # ~0.35us per-step overhead across several images per step.
    nblk = N // 2 if (N >= 2 and N % 2 == 0) else 1
    grid = N // nblk

    kernel = _make_conv_kernel(H, W, Cin, Cout, nblk)

    return pl.pallas_call(
        kernel,
        out_shape=jax.ShapeDtypeStruct((N, Cout, HW), x_flat.dtype),
        grid_spec=pltpu.PrefetchScalarGridSpec(
            num_scalar_prefetch=0,
            grid=(grid,),
            in_specs=[
                pl.BlockSpec((nblk, Cin, HW), lambda i: (i, 0, 0)),
                pl.BlockSpec((Cout, K), lambda i: (0, 0)),     # VMEM resident
                pl.BlockSpec((Cout, 1), lambda i: (0, 0)),     # VMEM resident
            ],
            out_specs=pl.BlockSpec((nblk, Cout, HW), lambda i: (i, 0, 0)),
            scratch_shapes=[pltpu.VMEM((K, HW), x_flat.dtype)],
        ),
        compiler_params=pltpu.CompilerParams(
            dimension_semantics=("parallel",)),
    )(x_flat, a_mat, bias.reshape(Cout, 1))


def video_wrapper_forward(x_btchw, weight_oihw, bias):
    """VideoWrapper.forward: BTCHW -> BTC'HW with the wrapped conv model.

    x_btchw:     (B, T, Cin, H, W)   (PyTorch axis convention)
    weight_oihw: (Cout, Cin, 3, 3)   (PyTorch Conv2d weight layout)
    bias:        (Cout,)
    returns:     (B, T, Cout, H, W)
    """
    B, T, Cin, H, W = x_btchw.shape
    Cout = weight_oihw.shape[0]

    # 'b t c h w -> (b t) c (h w)': pure reshapes, no transpose / pad copies.
    x_flat = x_btchw.reshape(B * T, Cin, H * W)

    # Fold the 3x3 taps into the contraction dim: A[co, (kh,kw,ci)], K = 9*Cin.
    a_mat = jnp.transpose(weight_oihw, (0, 2, 3, 1)).reshape(Cout, KH * KW * Cin)

    y_flat = conv3x3_pallas(x_flat, a_mat, bias, H, W)

    # '(b t) c (h w) -> b t c h w': pure reshape.
    return y_flat.reshape(B, T, Cout, H, W)


def _reference_forward(x_btchw, weight_oihw, bias):
    """Pure-JAX reference (lax conv, NCHW/OIHW) for correctness checking."""
    B, T, Cin, H, W = x_btchw.shape
    Cout = weight_oihw.shape[0]
    x = x_btchw.reshape(B * T, Cin, H, W)
    y = lax.conv_general_dilated(
        x, weight_oihw, window_strides=(1, 1), padding="SAME",
        dimension_numbers=("NCHW", "OIHW", "NCHW"),
        precision=lax.Precision.HIGHEST)
    y = y + bias[None, :, None, None]
    return y.reshape(B, T, Cout, H, W)


if __name__ == "__main__":
    # Small shapes consistent with a BTCHW video input.
    B, T, Cin, H, W = 2, 4, 4, 16, 16
    Cout = 8

    key = jax.random.PRNGKey(0)
    kx, kw_, kb = jax.random.split(key, 3)

    x = jax.random.normal(kx, (B, T, Cin, H, W), dtype=jnp.float32)
    # Deterministic "kaiming-ish" init for the wrapped Conv2d(Cin, Cout, 3, padding=1).
    fan_in = Cin * KH * KW
    weight = jax.random.normal(kw_, (Cout, Cin, KH, KW),
                               dtype=jnp.float32) / jnp.sqrt(fan_in)
    bias = jax.random.normal(kb, (Cout,), dtype=jnp.float32) * 0.01

    fwd = jax.jit(video_wrapper_forward)
    y = fwd(x, weight, bias)
    jax.block_until_ready(y)

    y_ref = _reference_forward(x, weight, bias)
    assert y.shape == (B, T, Cout, H, W)
    assert jnp.allclose(y, y_ref, atol=1e-4, rtol=1e-4), \
        float(jnp.max(jnp.abs(y - y_ref)))

    print("KERNEL_OK")
</pallas_src>

<mosaic_0001>
module attributes {stable_mosaic.version = 11 : i64} {
  func.func @kernel(%arg0: i32, %arg1: memref<4x4x256xf32, #tpu.memory_space<vmem>>, %arg2: memref<8x36xf32, #tpu.memory_space<vmem>>, %arg3: memref<8x1xf32, #tpu.memory_space<vmem>>, %arg4: memref<4x8x256xf32, #tpu.memory_space<vmem>>, %arg5: memref<36x256xf32, #tpu.memory_space<vmem>>) attributes {dimension_semantics = [#tpu.dimension_semantics<parallel>], iteration_bounds = array<i64: 2>, scalar_prefetch = 0 : i64, scratch_operands = 1 : i64, tpu.core_type = #tpu.core_type<tc>, window_params = [{transform_indices = @transform_0, window_bounds = array<i64: 4, 4, 256>}, {pipeline_mode = #tpu.pipeline_mode<synchronous>, transform_indices = @transform_1, window_bounds = array<i64: 8, 36>}, {pipeline_mode = #tpu.pipeline_mode<synchronous>, transform_indices = @transform_2, window_bounds = array<i64: 8, 1>}, {transform_indices = @transform_3, window_bounds = array<i64: 4, 8, 256>}]} {
    %0 = tpu.iota {dimensions = array<i32: 1>} : vector<4x256xi32>
    %c16_i32 = arith.constant 16 : i32
    %c0_i32 = arith.constant 0 : i32
    %1 = arith.cmpi eq, %c16_i32, %c0_i32 : i32
    %c1_i32 = arith.constant 1 : i32
    %2 = arith.select %1, %c1_i32, %c16_i32 : i32
    %3 = vector.broadcast %2 : i32 to vector<4x256xi32>
    %4 = arith.remsi %0, %3 : vector<4x256xi32>
    %c0_i32_0 = arith.constant 0 : i32
    %5 = vector.broadcast %c0_i32_0 : i32 to vector<4x256xi32>
    %6 = arith.cmpi ne, %4, %5 : vector<4x256xi32>
    %c0_i32_1 = arith.constant 0 : i32
    %7 = vector.broadcast %c0_i32_1 : i32 to vector<4x256xi32>
    %8 = arith.cmpi slt, %4, %7 : vector<4x256xi32>
    %c0_i32_2 = arith.constant 0 : i32
    %9 = arith.cmpi slt, %2, %c0_i32_2 : i32
    %10 = vector.broadcast %9 : i1 to vector<4x256xi1>
    %11 = vector.broadcast %10 : vector<4x256xi1> to vector<4x256xi1>
    %12 = arith.xori %8, %11 : vector<4x256xi1>
    %13 = arith.andi %12, %6 : vector<4x256xi1>
    %14 = vector.broadcast %2 : i32 to vector<4x256xi32>
    %15 = arith.addi %4, %14 : vector<4x256xi32>
    %16 = arith.select %13, %15, %4 : vector<4x256xi1>, vector<4x256xi32>
    %c1_i32_3 = arith.constant 1 : i32
    %17 = vector.broadcast %c1_i32_3 : i32 to vector<4x256xi32>
    %18 = arith.cmpi sge, %16, %17 : vector<4x256xi32>
    %c14_i32 = arith.constant 14 : i32
    %19 = vector.broadcast %c14_i32 : i32 to vector<4x256xi32>
    %20 = arith.cmpi sle, %16, %19 : vector<4x256xi32>
    %c0 = arith.constant 0 : index
    %c0_4 = arith.constant 0 : index
    %21 = vector.load %arg2[%c0, %c0_4] : memref<8x36xf32, #tpu.memory_space<vmem>>, vector<8x36xf32>
    %c0_5 = arith.constant 0 : index
    %c0_6 = arith.constant 0 : index
    %22 = vector.load %arg3[%c0_5, %c0_6] : memref<8x1xf32, #tpu.memory_space<vmem>>, vector<8x1xf32>
    %c0_7 = arith.constant 0 : index
    %c0_8 = arith.constant 0 : index
    %c0_9 = arith.constant 0 : index
    %23 = vector.load %arg1[%c0_7, %c0_8, %c0_9] : memref<4x4x256xf32, #tpu.memory_space<vmem>>, vector<1x4x256xf32>
    %24 = vector.shape_cast %23 : vector<1x4x256xf32> to vector<4x256xf32>
    %cst = arith.constant 0.000000e+00 : f32
    %25 = vector.broadcast %cst : f32 to vector<4x17xf32>
    %26 = vector.extract_strided_slice %24 {offsets = [0, 0], sizes = [4, 239], strides = [1, 1]} : vector<4x256xf32> to vector<4x239xf32>
    %27 = tpu.concatenate %25, %26 in 1 : vector<4x17xf32>, vector<4x239xf32> -> vector<4x256xf32>
    %cst_10 = arith.constant 0.000000e+00 : f32
    %28 = vector.broadcast %cst_10 : f32 to vector<4x256xf32>
    %29 = arith.select %18, %27, %28 : vector<4x256xi1>, vector<4x256xf32>
    %c0_11 = arith.constant 0 : index
    %c0_12 = arith.constant 0 : index
    %30 = vector.load %arg5[%c0_11, %c0_12] : memref<36x256xf32, #tpu.memory_space<vmem>>, vector<4x256xf32>
    tpu.vector_store %arg5[%c0_11, %c0_12], %29 {strides = array<i32>} : memref<36x256xf32, #tpu.memory_space<vmem>>, vector<4x256xf32>,
    %cst_13 = arith.constant 0.000000e+00 : f32
    %31 = vector.broadcast %cst_13 : f32 to vector<4x16xf32>
    %32 = vector.extract_strided_slice %24 {offsets = [0, 0], sizes = [4, 240], strides = [1, 1]} : vector<4x256xf32> to vector<4x240xf32>
    %33 = tpu.concatenate %31, %32 in 1 : vector<4x16xf32>, vector<4x240xf32> -> vector<4x256xf32>
    %c4 = arith.constant 4 : index
    %c0_14 = arith.constant 0 : index
    %34 = vector.load %arg5[%c4, %c0_14] : memref<36x256xf32, #tpu.memory_space<vmem>>, vector<4x256xf32>
    tpu.vector_store %arg5[%c4, %c0_14], %33 {strides = array<i32>} : memref<36x256xf32, #tpu.memory_space<vmem>>, vector<4x256xf32>,
    %cst_15 = arith.constant 0.000000e+00 : f32
    %35 = vector.broadcast %cst_15 : f32 to vector<4x15xf32>
    %36 = vector.extract_strided_slice %24 {offsets = [0, 0], sizes = [4, 241], strides = [1, 1]} : vector<4x256xf32> to vector<4x241xf32>
    %37 = tpu.concatenate %35, %36 in 1 : vector<4x15xf32>, vector<4x241xf32> -> vector<4x256xf32>
    %cst_16 = arith.constant 0.000000e+00 : f32
    %38 = vector.broadcast %cst_16 : f32 to vector<4x256xf32>
    %39 = arith.select %20, %37, %38 : vector<4x256xi1>, vector<4x256xf32>
    %c8 = arith.constant 8 : index
    %c0_17 = arith.constant 0 : index
    %40 = vector.load %arg5[%c8, %c0_17] : memref<36x256xf32, #tpu.memory_space<vmem>>, vector<4x256xf32>
    tpu.vector_store %arg5[%c8, %c0_17], %39 {strides = array<i32>} : memref<36x256xf32, #tpu.memory_space<vmem>>, vector<4x256xf32>,
    %cst_18 = arith.constant 0.000000e+00 : f32
    %41 = vector.broadcast %cst_18 : f32 to vector<4x1xf32>
    %42 = vector.extract_strided_slice %24 {offsets = [0, 0], sizes = [4, 255], strides = [1, 1]} : vector<4x256xf32> to vector<4x255xf32>
    %43 = tpu.concatenate %41, %42 in 1 : vector<4x1xf32>, vector<4x255xf32> -> vector<4x256xf32>
    %cst_19 = arith.constant 0.000000e+00 : f32
    %44 = vector.broadcast %cst_19 : f32 to vector<4x256xf32>
    %45 = arith.select %18, %43, %44 : vector<4x256xi1>, vector<4x256xf32>
    %c12 = arith.constant 12 : index
    %c0_20 = arith.constant 0 : index
    %46 = vector.load %arg5[%c12, %c0_20] : memref<36x256xf32, #tpu.memory_space<vmem>>, vector<4x256xf32>
    tpu.vector_store %arg5[%c12, %c0_20], %45 {strides = array<i32>} : memref<36x256xf32, #tpu.memory_space<vmem>>, vector<4x256xf32>,
    %c16 = arith.constant 16 : index
    %c0_21 = arith.constant 0 : index
    %47 = vector.load %arg5[%c16, %c0_21] : memref<36x256xf32, #tpu.memory_space<vmem>>, vector<4x256xf32>
    tpu.vector_store %arg5[%c16, %c0_21], %24 {strides = array<i32>} : memref<36x256xf32, #tpu.memory_space<vmem>>, vector<4x256xf32>,
    %cst_22 = arith.constant 0.000000e+00 : f32
    %48 = vector.broadcast %cst_22 : f32 to vector<4x1xf32>
    %49 = vector.extract_strided_slice %24 {offsets = [0, 1], sizes = [4, 255], strides = [1, 1]} : vector<4x256xf32> to vector<4x255xf32>
    %50 = tpu.concatenate %49, %48 in 1 : vector<4x255xf32>, vector<4x1xf32> -> vector<4x256xf32>
    %cst_23 = arith.constant 0.000000e+00 : f32
    %51 = vector.broadcast %cst_23 : f32 to vector<4x256xf32>
    %52 = arith.select %20, %50, %51 : vector<4x256xi1>, vector<4x256xf32>
    %c20 = arith.constant 20 : index
    %c0_24 = arith.constant 0 : index
    %53 = vector.load %arg5[%c20, %c0_24] : memref<36x256xf32, #tpu.memory_space<vmem>>, vector<4x256xf32>
    tpu.vector_store %arg5[%c20, %c0_24], %52 {strides = array<i32>} : memref<36x256xf32, #tpu.memory_space<vmem>>, vector<4x256xf32>,
    %cst_25 = arith.constant 0.000000e+00 : f32
    %54 = vector.broadcast %cst_25 : f32 to vector<4x15xf32>
    %55 = vector.extract_strided_slice %24 {offsets = [0, 15], sizes = [4, 241], strides = [1, 1]} : vector<4x256xf32> to vector<4x241xf32>
    %56 = tpu.concatenate %55, %54 in 1 : vector<4x241xf32>, vector<4x15xf32> -> vector<4x256xf32>
    %cst_26 = arith.constant 0.000000e+00 : f32
    %57 = vector.broadcast %cst_26 : f32 to vector<4x256xf32>
    %58 = arith.select %18, %56, %57 : vector<4x256xi1>, vector<4x256xf32>
    %c24 = arith.constant 24 : index
    %c0_27 = arith.constant 0 : index
    %59 = vector.load %arg5[%c24, %c0_27] : memref<36x256xf32, #tpu.memory_space<vmem>>, vector<4x256xf32>
    tpu.vector_store %arg5[%c24, %c0_27], %58 {strides = array<i32>} : memref<36x256xf32, #tpu.memory_space<vmem>>, vector<4x256xf32>,
    %cst_28 = arith.constant 0.000000e+00 : f32
    %60 = vector.broadcast %cst_28 : f32 to vector<4x16xf32>
    %61 = vector.extract_strided_slice %24 {offsets = [0, 16], sizes = [4, 240], strides = [1, 1]} : vector<4x256xf32> to vector<4x240xf32>
    %62 = tpu.concatenate %61, %60 in 1 : vector<4x240xf32>, vector<4x16xf32> -> vector<4x256xf32>
    %c28 = arith.constant 28 : index
    %c0_29 = arith.constant 0 : index
    %63 = vector.load %arg5[%c28, %c0_29] : memref<36x256xf32, #tpu.memory_space<vmem>>, vector<4x256xf32>
    tpu.vector_store %arg5[%c28, %c0_29], %62 {strides = array<i32>} : memref<36x256xf32, #tpu.memory_space<vmem>>, vector<4x256xf32>,
    %cst_30 = arith.constant 0.000000e+00 : f32
    %64 = vector.broadcast %cst_30 : f32 to vector<4x17xf32>
    %65 = vector.extract_strided_slice %24 {offsets = [0, 17], sizes = [4, 239], strides = [1, 1]} : vector<4x256xf32> to vector<4x239xf32>
    %66 = tpu.concatenate %65, %64 in 1 : vector<4x239xf32>, vector<4x17xf32> -> vector<4x256xf32>
    %cst_31 = arith.constant 0.000000e+00 : f32
    %67 = vector.broadcast %cst_31 : f32 to vector<4x256xf32>
    %68 = arith.select %20, %66, %67 : vector<4x256xi1>, vector<4x256xf32>
    %c32 = arith.constant 32 : index
    %c0_32 = arith.constant 0 : index
    %69 = vector.load %arg5[%c32, %c0_32] : memref<36x256xf32, #tpu.memory_space<vmem>>, vector<4x256xf32>
    tpu.vector_store %arg5[%c32, %c0_32], %68 {strides = array<i32>} : memref<36x256xf32, #tpu.memory_space<vmem>>, vector<4x256xf32>,
    %c0_33 = arith.constant 0 : index
    %c0_34 = arith.constant 0 : index
    %70 = vector.load %arg5[%c0_33, %c0_34] : memref<36x256xf32, #tpu.memory_space<vmem>>, vector<36x256xf32>
    %cst_35 = arith.constant dense<0.000000e+00> : vector<8x256xf32>
    %71 = tpu.matmul %21, %70, %cst_35 {dimension_numbers = #tpu.dot_dimension_numbers<[1], [0], [0], [1], [0, 0, 1, 1], [], []>} : vector<8x36xf32>, vector<36x256xf32>, vector<8x256xf32> -> vector<8x256xf32>
    %72 = vector.broadcast %22 : vector<8x1xf32> to vector<8x256xf32>
    %73 = arith.addf %71, %72 : vector<8x256xf32>
    %c0_36 = arith.constant 0 : index
    %c0_37 = arith.constant 0 : index
    %c0_38 = arith.constant 0 : index
    %74 = vector.load %arg4[%c0_36, %c0_37, %c0_38] : memref<4x8x256xf32, #tpu.memory_space<vmem>>, vector<1x8x256xf32>
    %75 = vector.shape_cast %74 : vector<1x8x256xf32> to vector<8x256xf32>
    %76 = vector.shape_cast %73 : vector<8x256xf32> to vector<1x8x256xf32>
    tpu.vector_store %arg4[%c0_36, %c0_37, %c0_38], %76 {strides = array<i32>} : memref<4x8x256xf32, #tpu.memory_space<vmem>>, vector<1x8x256xf32>,
    %c1 = arith.constant 1 : index
    %c0_39 = arith.constant 0 : index
    %c0_40 = arith.constant 0 : index
    %77 = vector.load %arg1[%c1, %c0_39, %c0_40] : memref<4x4x256xf32, #tpu.memory_space<vmem>>, vector<1x4x256xf32>
    %78 = vector.shape_cast %77 : vector<1x4x256xf32> to vector<4x256xf32>
    %cst_41 = arith.constant 0.000000e+00 : f32
    %79 = vector.broadcast %cst_41 : f32 to vector<4x17xf32>
    %80 = vector.extract_strided_slice %78 {offsets = [0, 0], sizes = [4, 239], strides = [1, 1]} : vector<4x256xf32> to vector<4x239xf32>
    %81 = tpu.concatenate %79, %80 in 1 : vector<4x17xf32>, vector<4x239xf32> -> vector<4x256xf32>
    %cst_42 = arith.constant 0.000000e+00 : f32
    %82 = vector.broadcast %cst_42 : f32 to vector<4x256xf32>
    %83 = arith.select %18, %81, %82 : vector<4x256xi1>, vector<4x256xf32>
    %c0_43 = arith.constant 0 : index
    %c0_44 = arith.constant 0 : index
    %84 = vector.load %arg5[%c0_43, %c0_44] : memref<36x256xf32, #tpu.memory_space<vmem>>, vector<4x256xf32>
    tpu.vector_store %arg5[%c0_43, %c0_44], %83 {strides = array<i32>} : memref<36x256xf32, #tpu.memory_space<vmem>>, vector<4x256xf32>,
    %cst_45 = arith.constant 0.000000e+00 : f32
    %85 = vector.broadcast %cst_45 : f32 to vector<4x16xf32>
    %86 = vector.extract_strided_slice %78 {offsets = [0, 0], sizes = [4, 240], strides = [1, 1]} : vector<4x256xf32> to vector<4x240xf32>
    %87 = tpu.concatenate %85, %86 in 1 : vector<4x16xf32>, vector<4x240xf32> -> vector<4x256xf32>
    %c4_46 = arith.constant 4 : index
    %c0_47 = arith.constant 0 : index
    %88 = vector.load %arg5[%c4_46, %c0_47] : memref<36x256xf32, #tpu.memory_space<vmem>>, vector<4x256xf32>
    tpu.vector_store %arg5[%c4_46, %c0_47], %87 {strides = array<i32>} : memref<36x256xf32, #tpu.memory_space<vmem>>, vector<4x256xf32>,
    %cst_48 = arith.constant 0.000000e+00 : f32
    %89 = vector.broadcast %cst_48 : f32 to vector<4x15xf32>
    %90 = vector.extract_strided_slice %78 {offsets = [0, 0], sizes = [4, 241], strides = [1, 1]} : vector<4x256xf32> to vector<4x241xf32>
    %91 = tpu.concatenate %89, %90 in 1 : vector<4x15xf32>, vector<4x241xf32> -> vector<4x256xf32>
    %cst_49 = arith.constant 0.000000e+00 : f32
    %92 = vector.broadcast %cst_49 : f32 to vector<4x256xf32>
    %93 = arith.select %20, %91, %92 : vector<4x256xi1>, vector<4x256xf32>
    %c8_50 = arith.constant 8 : index
    %c0_51 = arith.constant 0 : index
    %94 = vector.load %arg5[%c8_50, %c0_51] : memref<36x256xf32, #tpu.memory_space<vmem>>, vector<4x256xf32>
    tpu.vector_store %arg5[%c8_50, %c0_51], %93 {strides = array<i32>} : memref<36x256xf32, #tpu.memory_space<vmem>>, vector<4x256xf32>,
    %cst_52 = arith.constant 0.000000e+00 : f32
    %95 = vector.broadcast %cst_52 : f32 to vector<4x1xf32>
    %96 = vector.extract_strided_slice %78 {offsets = [0, 0], sizes = [4, 255], strides = [1, 1]} : vector<4x256xf32> to vector<4x255xf32>
    %97 = tpu.concatenate %95, %96 in 1 : vector<4x1xf32>, vector<4x255xf32> -> vector<4x256xf32>
    %cst_53 = arith.constant 0.000000e+00 : f32
    %98 = vector.broadcast %cst_53 : f32 to vector<4x256xf32>
    %99 = arith.select %18, %97, %98 : vector<4x256xi1>, vector<4x256xf32>
    %c12_54 = arith.constant 12 : index
    %c0_55 = arith.constant 0 : index
    %100 = vector.load %arg5[%c12_54, %c0_55] : memref<36x256xf32, #tpu.memory_space<vmem>>, vector<4x256xf32>
    tpu.vector_store %arg5[%c12_54, %c0_55], %99 {strides = array<i32>} : memref<36x256xf32, #tpu.memory_space<vmem>>, vector<4x256xf32>,
    %c16_56 = arith.constant 16 : index
    %c0_57 = arith.constant 0 : index
    %101 = vector.load %arg5[%c16_56, %c0_57] : memref<36x256xf32, #tpu.memory_space<vmem>>, vector<4x256xf32>
    tpu.vector_store %arg5[%c16_56, %c0_57], %78 {strides = array<i32>} : memref<36x256xf32, #tpu.memory_space<vmem>>, vector<4x256xf32>,
    %cst_58 = arith.constant 0.000000e+00 : f32
    %102 = vector.broadcast %cst_58 : f32 to vector<4x1xf32>
    %103 = vector.extract_strided_slice %78 {offsets = [0, 1], sizes = [4, 255], strides = [1, 1]} : vector<4x256xf32> to vector<4x255xf32>
    %104 = tpu.concatenate %103, %102 in 1 : vector<4x255xf32>, vector<4x1xf32> -> vector<4x256xf32>
    %cst_59 = arith.constant 0.000000e+00 : f32
    %105 = vector.broadcast %cst_59 : f32 to vector<4x256xf32>
    %106 = arith.select %20, %104, %105 : vector<4x256xi1>, vector<4x256xf32>
    %c20_60 = arith.constant 20 : index
    %c0_61 = arith.constant 0 : index
    %107 = vector.load %arg5[%c20_60, %c0_61] : memref<36x256xf32, #tpu.memory_space<vmem>>, vector<4x256xf32>
    tpu.vector_store %arg5[%c20_60, %c0_61], %106 {strides = array<i32>} : memref<36x256xf32, #tpu.memory_space<vmem>>, vector<4x256xf32>,
    %cst_62 = arith.constant 0.000000e+00 : f32
    %108 = vector.broadcast %cst_62 : f32 to vector<4x15xf32>
    %109 = vector.extract_strided_slice %78 {offsets = [0, 15], sizes = [4, 241], strides = [1, 1]} : vector<4x256xf32> to vector<4x241xf32>
    %110 = tpu.concatenate %109, %108 in 1 : vector<4x241xf32>, vector<4x15xf32> -> vector<4x256xf32>
    %cst_63 = arith.constant 0.000000e+00 : f32
    %111 = vector.broadcast %cst_63 : f32 to vector<4x256xf32>
    %112 = arith.select %18, %110, %111 : vector<4x256xi1>, vector<4x256xf32>
    %c24_64 = arith.constant 24 : index
    %c0_65 = arith.constant 0 : index
    %113 = vector.load %arg5[%c24_64, %c0_65] : memref<36x256xf32, #tpu.memory_space<vmem>>, vector<4x256xf32>
    tpu.vector_store %arg5[%c24_64, %c0_65], %112 {strides = array<i32>} : memref<36x256xf32, #tpu.memory_space<vmem>>, vector<4x256xf32>,
    %cst_66 = arith.constant 0.000000e+00 : f32
    %114 = vector.broadcast %cst_66 : f32 to vector<4x16xf32>
    %115 = vector.extract_strided_slice %78 {offsets = [0, 16], sizes = [4, 240], strides = [1, 1]} : vector<4x256xf32> to vector<4x240xf32>
    %116 = tpu.concatenate %115, %114 in 1 : vector<4x240xf32>, vector<4x16xf32> -> vector<4x256xf32>
    %c28_67 = arith.constant 28 : index
    %c0_68 = arith.constant 0 : index
    %117 = vector.load %arg5[%c28_67, %c0_68] : memref<36x256xf32, #tpu.memory_space<vmem>>, vector<4x256xf32>
    tpu.vector_store %arg5[%c28_67, %c0_68], %116 {strides = array<i32>} : memref<36x256xf32, #tpu.memory_space<vmem>>, vector<4x256xf32>,
    %cst_69 = arith.constant 0.000000e+00 : f32
    %118 = vector.broadcast %cst_69 : f32 to vector<4x17xf32>
    %119 = vector.extract_strided_slice %78 {offsets = [0, 17], sizes = [4, 239], strides = [1, 1]} : vector<4x256xf32> to vector<4x239xf32>
    %120 = tpu.concatenate %119, %118 in 1 : vector<4x239xf32>, vector<4x17xf32> -> vector<4x256xf32>
    %cst_70 = arith.constant 0.000000e+00 : f32
    %121 = vector.broadcast %cst_70 : f32 to vector<4x256xf32>
    %122 = arith.select %20, %120, %121 : vector<4x256xi1>, vector<4x256xf32>
    %c32_71 = arith.constant 32 : index
    %c0_72 = arith.constant 0 : index
    %123 = vector.load %arg5[%c32_71, %c0_72] : memref<36x256xf32, #tpu.memory_space<vmem>>, vector<4x256xf32>
    tpu.vector_store %arg5[%c32_71, %c0_72], %122 {strides = array<i32>} : memref<36x256xf32, #tpu.memory_space<vmem>>, vector<4x256xf32>,
    %c0_73 = arith.constant 0 : index
    %c0_74 = arith.constant 0 : index
    %124 = vector.load %arg5[%c0_73, %c0_74] : memref<36x256xf32, #tpu.memory_space<vmem>>, vector<36x256xf32>
    %cst_75 = arith.constant dense<0.000000e+00> : vector<8x256xf32>
    %125 = tpu.matmul %21, %124, %cst_75 {dimension_numbers = #tpu.dot_dimension_numbers<[1], [0], [0], [1], [0, 0, 1, 1], [], []>} : vector<8x36xf32>, vector<36x256xf32>, vector<8x256xf32> -> vector<8x256xf32>
    %126 = vector.broadcast %22 : vector<8x1xf32> to vector<8x256xf32>
    %127 = arith.addf %125, %126 : vector<8x256xf32>
    %c1_76 = arith.constant 1 : index
    %c0_77 = arith.constant 0 : index
    %c0_78 = arith.constant 0 : index
    %128 = vector.load %arg4[%c1_76, %c0_77, %c0_78] : memref<4x8x256xf32, #tpu.memory_space<vmem>>, vector<1x8x256xf32>
    %129 = vector.shape_cast %128 : vector<1x8x256xf32> to vector<8x256xf32>
    %130 = vector.shape_cast %127 : vector<8x256xf32> to vector<1x8x256xf32>
    tpu.vector_store %arg4[%c1_76, %c0_77, %c0_78], %130 {strides = array<i32>} : memref<4x8x256xf32, #tpu.memory_space<vmem>>, vector<1x8x256xf32>,
    %c2 = arith.constant 2 : index
    %c0_79 = arith.constant 0 : index
    %c0_80 = arith.constant 0 : index
    %131 = vector.load %arg1[%c2, %c0_79, %c0_80] : memref<4x4x256xf32, #tpu.memory_space<vmem>>, vector<1x4x256xf32>
    %132 = vector.shape_cast %131 : vector<1x4x256xf32> to vector<4x256xf32>
    %cst_81 = arith.constant 0.000000e+00 : f32
    %133 = vector.broadcast %cst_81 : f32 to vector<4x17xf32>
    %134 = vector.extract_strided_slice %132 {offsets = [0, 0], sizes = [4, 239], strides = [1, 1]} : vector<4x256xf32> to vector<4x239xf32>
    %135 = tpu.concatenate %133, %134 in 1 : vector<4x17xf32>, vector<4x239xf32> -> vector<4x256xf32>
    %cst_82 = arith.constant 0.000000e+00 : f32
    %136 = vector.broadcast %cst_82 : f32 to vector<4x256xf32>
    %137 = arith.select %18, %135, %136 : vector<4x256xi1>, vector<4x256xf32>
    %c0_83 = arith.constant 0 : index
    %c0_84 = arith.constant 0 : index
    %138 = vector.load %arg5[%c0_83, %c0_84] : memref<36x256xf32, #tpu.memory_space<vmem>>, vector<4x256xf32>
    tpu.vector_store %arg5[%c0_83, %c0_84], %137 {strides = array<i32>} : memref<36x256xf32, #tpu.memory_space<vmem>>, vector<4x256xf32>,
    %cst_85 = arith.constant 0.000000e+00 : f32
    %139 = vector.broadcast %cst_85 : f32 to vector<4x16xf32>
    %140 = vector.extract_strided_slice %132 {offsets = [0, 0], sizes = [4, 240], strides = [1, 1]} : vector<4x256xf32> to vector<4x240xf32>
    %141 = tpu.concatenate %139, %140 in 1 : vector<4x16xf32>, vector<4x240xf32> -> vector<4x256xf32>
    %c4_86 = arith.constant 4 : index
    %c0_87 = arith.constant 0 : index
    %142 = vector.load %arg5[%c4_86, %c0_87] : memref<36x256xf32, #tpu.memory_space<vmem>>, vector<4x256xf32>
    tpu.vector_store %arg5[%c4_86, %c0_87], %141 {strides = array<i32>} : memref<36x256xf32, #tpu.memory_space<vmem>>, vector<4x256xf32>,
    %cst_88 = arith.constant 0.000000e+00 : f32
    %143 = vector.broadcast %cst_88 : f32 to vector<4x15xf32>
    %144 = vector.extract_strided_slice %132 {offsets = [0, 0], sizes = [4, 241], strides = [1, 1]} : vector<4x256xf32> to vector<4x241xf32>
    %145 = tpu.concatenate %143, %144 in 1 : vector<4x15xf32>, vector<4x241xf32> -> vector<4x256xf32>
    %cst_89 = arith.constant 0.000000e+00 : f32
    %146 = vector.broadcast %cst_89 : f32 to vector<4x256xf32>
    %147 = arith.select %20, %145, %146 : vector<4x256xi1>, vector<4x256xf32>
    %c8_90 = arith.constant 8 : index
    %c0_91 = arith.constant 0 : index
    %148 = vector.load %arg5[%c8_90, %c0_91] : memref<36x256xf32, #tpu.memory_space<vmem>>, vector<4x256xf32>
    tpu.vector_store %arg5[%c8_90, %c0_91], %147 {strides = array<i32>} : memref<36x256xf32, #tpu.memory_space<vmem>>, vector<4x256xf32>,
    %cst_92 = arith.constant 0.000000e+00 : f32
    %149 = vector.broadcast %cst_92 : f32 to vector<4x1xf32>
    %150 = vector.extract_strided_slice %132 {offsets = [0, 0], sizes = [4, 255], strides = [1, 1]} : vector<4x256xf32> to vector<4x255xf32>
    %151 = tpu.concatenate %149, %150 in 1 : vector<4x1xf32>, vector<4x255xf32> -> vector<4x256xf32>
    %cst_93 = arith.constant 0.000000e+00 : f32
    %152 = vector.broadcast %cst_93 : f32 to vector<4x256xf32>
    %153 = arith.select %18, %151, %152 : vector<4x256xi1>, vector<4x256xf32>
    %c12_94 = arith.constant 12 : index
    %c0_95 = arith.constant 0 : index
    %154 = vector.load %arg5[%c12_94, %c0_95] : memref<36x256xf32, #tpu.memory_space<vmem>>, vector<4x256xf32>
    tpu.vector_store %arg5[%c12_94, %c0_95], %153 {strides = array<i32>} : memref<36x256xf32, #tpu.memory_space<vmem>>, vector<4x256xf32>,
    %c16_96 = arith.constant 16 : index
    %c0_97 = arith.constant 0 : index
    %155 = vector.load %arg5[%c16_96, %c0_97] : memref<36x256xf32, #tpu.memory_space<vmem>>, vector<4x256xf32>
    tpu.vector_store %arg5[%c16_96, %c0_97], %132 {strides = array<i32>} : memref<36x256xf32, #tpu.memory_space<vmem>>, vector<4x256xf32>,
    %cst_98 = arith.constant 0.000000e+00 : f32
    %156 = vector.broadcast %cst_98 : f32 to vector<4x1xf32>
    %157 = vector.extract_strided_slice %132 {offsets = [0, 1], sizes = [4, 255], strides = [1, 1]} : vector<4x256xf32> to vector<4x255xf32>
    %158 = tpu.concatenate %157, %156 in 1 : vector<4x255xf32>, vector<4x1xf32> -> vector<4x256xf32>
    %cst_99 = arith.constant 0.000000e+00 : f32
    %159 = vector.broadcast %cst_99 : f32 to vector<4x256xf32>
    %160 = arith.select %20, %158, %159 : vector<4x256xi1>, vector<4x256xf32>
    %c20_100 = arith.constant 20 : index
    %c0_101 = arith.constant 0 : index
    %161 = vector.load %arg5[%c20_100, %c0_101] : memref<36x256xf32, #tpu.memory_space<vmem>>, vector<4x256xf32>
    tpu.vector_store %arg5[%c20_100, %c0_101], %160 {strides = array<i32>} : memref<36x256xf32, #tpu.memory_space<vmem>>, vector<4x256xf32>,
    %cst_102 = arith.constant 0.000000e+00 : f32
    %162 = vector.broadcast %cst_102 : f32 to vector<4x15xf32>
    %163 = vector.extract_strided_slice %132 {offsets = [0, 15], sizes = [4, 241], strides = [1, 1]} : vector<4x256xf32> to vector<4x241xf32>
    %164 = tpu.concatenate %163, %162 in 1 : vector<4x241xf32>, vector<4x15xf32> -> vector<4x256xf32>
    %cst_103 = arith.constant 0.000000e+00 : f32
    %165 = vector.broadcast %cst_103 : f32 to vector<4x256xf32>
    %166 = arith.select %18, %164, %165 : vector<4x256xi1>, vector<4x256xf32>
    %c24_104 = arith.constant 24 : index
    %c0_105 = arith.constant 0 : index
    %167 = vector.load %arg5[%c24_104, %c0_105] : memref<36x256xf32, #tpu.memory_space<vmem>>, vector<4x256xf32>
    tpu.vector_store %arg5[%c24_104, %c0_105], %166 {strides = array<i32>} : memref<36x256xf32, #tpu.memory_space<vmem>>, vector<4x256xf32>,
    %cst_106 = arith.constant 0.000000e+00 : f32
    %168 = vector.broadcast %cst_106 : f32 to vector<4x16xf32>
    %169 = vector.extract_strided_slice %132 {offsets = [0, 16], sizes = [4, 240], strides = [1, 1]} : vector<4x256xf32> to vector<4x240xf32>
    %170 = tpu.concatenate %169, %168 in 1 : vector<4x240xf32>, vector<4x16xf32> -> vector<4x256xf32>
    %c28_107 = arith.constant 28 : index
    %c0_108 = arith.constant 0 : index
    %171 = vector.load %arg5[%c28_107, %c0_108] : memref<36x256xf32, #tpu.memory_space<vmem>>, vector<4x256xf32>
    tpu.vector_store %arg5[%c28_107, %c0_108], %170 {strides = array<i32>} : memref<36x256xf32, #tpu.memory_space<vmem>>, vector<4x256xf32>,
    %cst_109 = arith.constant 0.000000e+00 : f32
    %172 = vector.broadcast %cst_109 : f32 to vector<4x17xf32>
    %173 = vector.extract_strided_slice %132 {offsets = [0, 17], sizes = [4, 239], strides = [1, 1]} : vector<4x256xf32> to vector<4x239xf32>
    %174 = tpu.concatenate %173, %172 in 1 : vector<4x239xf32>, vector<4x17xf32> -> vector<4x256xf32>
    %cst_110 = arith.constant 0.000000e+00 : f32
    %175 = vector.broadcast %cst_110 : f32 to vector<4x256xf32>
    %176 = arith.select %20, %174, %175 : vector<4x256xi1>, vector<4x256xf32>
    %c32_111 = arith.constant 32 : index
    %c0_112 = arith.constant 0 : index
    %177 = vector.load %arg5[%c32_111, %c0_112] : memref<36x256xf32, #tpu.memory_space<vmem>>, vector<4x256xf32>
    tpu.vector_store %arg5[%c32_111, %c0_112], %176 {strides = array<i32>} : memref<36x256xf32, #tpu.memory_space<vmem>>, vector<4x256xf32>,
    %c0_113 = arith.constant 0 : index
    %c0_114 = arith.constant 0 : index
    %178 = vector.load %arg5[%c0_113, %c0_114] : memref<36x256xf32, #tpu.memory_space<vmem>>, vector<36x256xf32>
    %cst_115 = arith.constant dense<0.000000e+00> : vector<8x256xf32>
    %179 = tpu.matmul %21, %178, %cst_115 {dimension_numbers = #tpu.dot_dimension_numbers<[1], [0], [0], [1], [0, 0, 1, 1], [], []>} : vector<8x36xf32>, vector<36x256xf32>, vector<8x256xf32> -> vector<8x256xf32>
    %180 = vector.broadcast %22 : vector<8x1xf32> to vector<8x256xf32>
    %181 = arith.addf %179, %180 : vector<8x256xf32>
    %c2_116 = arith.constant 2 : index
    %c0_117 = arith.constant 0 : index
    %c0_118 = arith.constant 0 : index
    %182 = vector.load %arg4[%c2_116, %c0_117, %c0_118] : memref<4x8x256xf32, #tpu.memory_space<vmem>>, vector<1x8x256xf32>
    %183 = vector.shape_cast %182 : vector<1x8x256xf32> to vector<8x256xf32>
    %184 = vector.shape_cast %181 : vector<8x256xf32> to vector<1x8x256xf32>
    tpu.vector_store %arg4[%c2_116, %c0_117, %c0_118], %184 {strides = array<i32>} : memref<4x8x256xf32, #tpu.memory_space<vmem>>, vector<1x8x256xf32>,
    %c3 = arith.constant 3 : index
    %c0_119 = arith.constant 0 : index
    %c0_120 = arith.constant 0 : index
    %185 = vector.load %arg1[%c3, %c0_119, %c0_120] : memref<4x4x256xf32, #tpu.memory_space<vmem>>, vector<1x4x256xf32>
    %186 = vector.shape_cast %185 : vector<1x4x256xf32> to vector<4x256xf32>
    %cst_121 = arith.constant 0.000000e+00 : f32
    %187 = vector.broadcast %cst_121 : f32 to vector<4x17xf32>
    %188 = vector.extract_strided_slice %186 {offsets = [0, 0], sizes = [4, 239], strides = [1, 1]} : vector<4x256xf32> to vector<4x239xf32>
    %189 = tpu.concatenate %187, %188 in 1 : vector<4x17xf32>, vector<4x239xf32> -> vector<4x256xf32>
    %cst_122 = arith.constant 0.000000e+00 : f32
    %190 = vector.broadcast %cst_122 : f32 to vector<4x256xf32>
    %191 = arith.select %18, %189, %190 : vector<4x256xi1>, vector<4x256xf32>
    %c0_123 = arith.constant 0 : index
    %c0_124 = arith.constant 0 : index
    %192 = vector.load %arg5[%c0_123, %c0_124] : memref<36x256xf32, #tpu.memory_space<vmem>>, vector<4x256xf32>
    tpu.vector_store %arg5[%c0_123, %c0_124], %191 {strides = array<i32>} : memref<36x256xf32, #tpu.memory_space<vmem>>, vector<4x256xf32>,
    %cst_125 = arith.constant 0.000000e+00 : f32
    %193 = vector.broadcast %cst_125 : f32 to vector<4x16xf32>
    %194 = vector.extract_strided_slice %186 {offsets = [0, 0], sizes = [4, 240], strides = [1, 1]} : vector<4x256xf32> to vector<4x240xf32>
    %195 = tpu.concatenate %193, %194 in 1 : vector<4x16xf32>, vector<4x240xf32> -> vector<4x256xf32>
    %c4_126 = arith.constant 4 : index
    %c0_127 = arith.constant 0 : index
    %196 = vector.load %arg5[%c4_126, %c0_127] : memref<36x256xf32, #tpu.memory_space<vmem>>, vector<4x256xf32>
    tpu.vector_store %arg5[%c4_126, %c0_127], %195 {strides = array<i32>} : memref<36x256xf32, #tpu.memory_space<vmem>>, vector<4x256xf32>,
    %cst_128 = arith.constant 0.000000e+00 : f32
    %197 = vector.broadcast %cst_128 : f32 to vector<4x15xf32>
    %198 = vector.extract_strided_slice %186 {offsets = [0, 0], sizes = [4, 241], strides = [1, 1]} : vector<4x256xf32> to vector<4x241xf32>
    %199 = tpu.concatenate %197, %198 in 1 : vector<4x15xf32>, vector<4x241xf32> -> vector<4x256xf32>
    %cst_129 = arith.constant 0.000000e+00 : f32
    %200 = vector.broadcast %cst_129 : f32 to vector<4x256xf32>
    %201 = arith.select %20, %199, %200 : vector<4x256xi1>, vector<4x256xf32>
    %c8_130 = arith.constant 8 : index
    %c0_131 = arith.constant 0 : index
    %202 = vector.load %arg5[%c8_130, %c0_131] : memref<36x256xf32, #tpu.memory_space<vmem>>, vector<4x256xf32>
    tpu.vector_store %arg5[%c8_130, %c0_131], %201 {strides = array<i32>} : memref<36x256xf32, #tpu.memory_space<vmem>>, vector<4x256xf32>,
    %cst_132 = arith.constant 0.000000e+00 : f32
    %203 = vector.broadcast %cst_132 : f32 to vector<4x1xf32>
    %204 = vector.extract_strided_slice %186 {offsets = [0, 0], sizes = [4, 255], strides = [1, 1]} : vector<4x256xf32> to vector<4x255xf32>
    %205 = tpu.concatenate %203, %204 in 1 : vector<4x1xf32>, vector<4x255xf32> -> vector<4x256xf32>
    %cst_133 = arith.constant 0.000000e+00 : f32
    %206 = vector.broadcast %cst_133 : f32 to vector<4x256xf32>
    %207 = arith.select %18, %205, %206 : vector<4x256xi1>, vector<4x256xf32>
    %c12_134 = arith.constant 12 : index
    %c0_135 = arith.constant 0 : index
    %208 = vector.load %arg5[%c12_134, %c0_135] : memref<36x256xf32, #tpu.memory_space<vmem>>, vector<4x256xf32>
    tpu.vector_store %arg5[%c12_134, %c0_135], %207 {strides = array<i32>} : memref<36x256xf32, #tpu.memory_space<vmem>>, vector<4x256xf32>,
    %c16_136 = arith.constant 16 : index
    %c0_137 = arith.constant 0 : index
    %209 = vector.load %arg5[%c16_136, %c0_137] : memref<36x256xf32, #tpu.memory_space<vmem>>, vector<4x256xf32>
    tpu.vector_store %arg5[%c16_136, %c0_137], %186 {strides = array<i32>} : memref<36x256xf32, #tpu.memory_space<vmem>>, vector<4x256xf32>,
    %cst_138 = arith.constant 0.000000e+00 : f32
    %210 = vector.broadcast %cst_138 : f32 to vector<4x1xf32>
    %211 = vector.extract_strided_slice %186 {offsets = [0, 1], sizes = [4, 255], strides = [1, 1]} : vector<4x256xf32> to vector<4x255xf32>
    %212 = tpu.concatenate %211, %210 in 1 : vector<4x255xf32>, vector<4x1xf32> -> vector<4x256xf32>
    %cst_139 = arith.constant 0.000000e+00 : f32
    %213 = vector.broadcast %cst_139 : f32 to vector<4x256xf32>
    %214 = arith.select %20, %212, %213 : vector<4x256xi1>, vector<4x256xf32>
    %c20_140 = arith.constant 20 : index
    %c0_141 = arith.constant 0 : index
    %215 = vector.load %arg5[%c20_140, %c0_141] : memref<36x256xf32, #tpu.memory_space<vmem>>, vector<4x256xf32>
    tpu.vector_store %arg5[%c20_140, %c0_141], %214 {strides = array<i32>} : memref<36x256xf32, #tpu.memory_space<vmem>>, vector<4x256xf32>,
    %cst_142 = arith.constant 0.000000e+00 : f32
    %216 = vector.broadcast %cst_142 : f32 to vector<4x15xf32>
    %217 = vector.extract_strided_slice %186 {offsets = [0, 15], sizes = [4, 241], strides = [1, 1]} : vector<4x256xf32> to vector<4x241xf32>
    %218 = tpu.concatenate %217, %216 in 1 : vector<4x241xf32>, vector<4x15xf32> -> vector<4x256xf32>
    %cst_143 = arith.constant 0.000000e+00 : f32
    %219 = vector.broadcast %cst_143 : f32 to vector<4x256xf32>
    %220 = arith.select %18, %218, %219 : vector<4x256xi1>, vector<4x256xf32>
    %c24_144 = arith.constant 24 : index
    %c0_145 = arith.constant 0 : index
    %221 = vector.load %arg5[%c24_144, %c0_145] : memref<36x256xf32, #tpu.memory_space<vmem>>, vector<4x256xf32>
    tpu.vector_store %arg5[%c24_144, %c0_145], %220 {strides = array<i32>} : memref<36x256xf32, #tpu.memory_space<vmem>>, vector<4x256xf32>,
    %cst_146 = arith.constant 0.000000e+00 : f32
    %222 = vector.broadcast %cst_146 : f32 to vector<4x16xf32>
    %223 = vector.extract_strided_slice %186 {offsets = [0, 16], sizes = [4, 240], strides = [1, 1]} : vector<4x256xf32> to vector<4x240xf32>
    %224 = tpu.concatenate %223, %222 in 1 : vector<4x240xf32>, vector<4x16xf32> -> vector<4x256xf32>
    %c28_147 = arith.constant 28 : index
    %c0_148 = arith.constant 0 : index
    %225 = vector.load %arg5[%c28_147, %c0_148] : memref<36x256xf32, #tpu.memory_space<vmem>>, vector<4x256xf32>
    tpu.vector_store %arg5[%c28_147, %c0_148], %224 {strides = array<i32>} : memref<36x256xf32, #tpu.memory_space<vmem>>, vector<4x256xf32>,
    %cst_149 = arith.constant 0.000000e+00 : f32
    %226 = vector.broadcast %cst_149 : f32 to vector<4x17xf32>
    %227 = vector.extract_strided_slice %186 {offsets = [0, 17], sizes = [4, 239], strides = [1, 1]} : vector<4x256xf32> to vector<4x239xf32>
    %228 = tpu.concatenate %227, %226 in 1 : vector<4x239xf32>, vector<4x17xf32> -> vector<4x256xf32>
    %cst_150 = arith.constant 0.000000e+00 : f32
    %229 = vector.broadcast %cst_150 : f32 to vector<4x256xf32>
    %230 = arith.select %20, %228, %229 : vector<4x256xi1>, vector<4x256xf32>
    %c32_151 = arith.constant 32 : index
    %c0_152 = arith.constant 0 : index
    %231 = vector.load %arg5[%c32_151, %c0_152] : memref<36x256xf32, #tpu.memory_space<vmem>>, vector<4x256xf32>
    tpu.vector_store %arg5[%c32_151, %c0_152], %230 {strides = array<i32>} : memref<36x256xf32, #tpu.memory_space<vmem>>, vector<4x256xf32>,
    %c0_153 = arith.constant 0 : index
    %c0_154 = arith.constant 0 : index
    %232 = vector.load %arg5[%c0_153, %c0_154] : memref<36x256xf32, #tpu.memory_space<vmem>>, vector<36x256xf32>
    %cst_155 = arith.constant dense<0.000000e+00> : vector<8x256xf32>
    %233 = tpu.matmul %21, %232, %cst_155 {dimension_numbers = #tpu.dot_dimension_numbers<[1], [0], [0], [1], [0, 0, 1, 1], [], []>} : vector<8x36xf32>, vector<36x256xf32>, vector<8x256xf32> -> vector<8x256xf32>
    %234 = vector.broadcast %22 : vector<8x1xf32> to vector<8x256xf32>
    %235 = arith.addf %233, %234 : vector<8x256xf32>
    %c3_156 = arith.constant 3 : index
    %c0_157 = arith.constant 0 : index
    %c0_158 = arith.constant 0 : index
    %236 = vector.load %arg4[%c3_156, %c0_157, %c0_158] : memref<4x8x256xf32, #tpu.memory_space<vmem>>, vector<1x8x256xf32>
    %237 = vector.shape_cast %236 : vector<1x8x256xf32> to vector<8x256xf32>
    %238 = vector.shape_cast %235 : vector<8x256xf32> to vector<1x8x256xf32>
    tpu.vector_store %arg4[%c3_156, %c0_157, %c0_158], %238 {strides = array<i32>} : memref<4x8x256xf32, #tpu.memory_space<vmem>>, vector<1x8x256xf32>,
    return
  }
  func.func @transform_0(%arg0: i32) -> (i32, i32, i32) {
    %c0_i32 = arith.constant 0 : i32
    %c0_i32_0 = arith.constant 0 : i32
    %c0_i32_1 = arith.constant 0 : i32
    return %arg0, %c0_i32, %c0_i32_0 : i32, i32, i32
  }
  func.func @transform_1(%arg0: i32) -> (i32, i32) {
    %c0_i32 = arith.constant 0 : i32
    %c0_i32_0 = arith.constant 0 : i32
    %c0_i32_1 = arith.constant 0 : i32
    return %c0_i32, %c0_i32_0 : i32, i32
  }
  func.func @transform_2(%arg0: i32) -> (i32, i32) {
    %c0_i32 = arith.constant 0 : i32
    %c0_i32_0 = arith.constant 0 : i32
    %c0_i32_1 = arith.constant 0 : i32
    return %c0_i32, %c0_i32_0 : i32, i32
  }
  func.func @transform_3(%arg0: i32) -> (i32, i32, i32) {
    %c0_i32 = arith.constant 0 : i32
    %c0_i32_0 = arith.constant 0 : i32
    %c0_i32_1 = arith.constant 0 : i32
    return %arg0, %c0_i32, %c0_i32_0 : i32, i32, i32
  }
}

</mosaic_0001>

<llo_original>
// kernel: video_wrapper_forward.1
$region0: #{video_wrapper_forward.1}
  #allocation0 [shape = 'u32[]', space=smem, size = 0x4, offset = 0x4, fixed_abs, tag = 'smem constant byte address 0x4 - core index']
  #allocation1 [shape = 'u32[144,128]{1,0:T(1,128)}', space=vmem, size = 0x12000, scoped, tag = 'internal scratch']
  #allocation2 [shape = 'f32[36,256]{1,0:T(8,128)}', space=vmem, size = 0xa000, scoped, tag = 'scratch operand']
  %s0 = inlined_call_operand.vmem [shape: f32[8,4,256], index: 0, kind: input, shape index: {}]
  %s1 = inlined_call_operand.vmem [shape: f32[8,36], index: 1, kind: input, shape index: {}]
  %s2 = inlined_call_operand.vmem [shape: f32[8,1], index: 2, kind: input, shape index: {}]
  %s3 = inlined_call_operand.vmem [shape: f32[8,8,256], index: 3, kind: output, shape index: {}]
  %s4 = sld [smem:[#allocation0]]
  $region45: #{video_wrapper_forward.1} parent=0
    _
  %s6 = ssub.s32 1, %s4
  %s7 = scalar_select 0, %s6, %s4
  loop: start=0, step=1, limit=4
  $region2: #{video_wrapper_forward.1} parent=0 // loop_pre_header
    _
  $region3: #{video_wrapper_forward.1} parent=0 // loop_header
    %s9 = sphi 0, %s13
    %p10 = scmp.ge.s32.totalorder %s9, 4
    %s19 = sphi 0, %s21
    %s22 = sphi 0, %s19
    %s23 = sphi 0, %s22
    %s39 = sphi 0, %s23
    %s43 = sphi 0, %s43
    %s45 = sphi 0, %s43
    %s46 = sphi 0, %s45
    %s60 = sphi 0, %s46
    %s64 = sphi 0, %s64
    %s66 = sphi 0, %s64
    %s67 = sphi 0, %s66
    %s81 = sphi 0, %s67
    %s87 = sphi 0, %s89
    %s90 = sphi 0, %s87
    %s91 = sphi 0, %s90
    %s107 = sphi 0, %s91
  $region4: #{video_wrapper_forward.1} parent=0 // loop_header_branch
    %12 = sbr.rel (%p10) target = $region8
  $region5: #{video_wrapper_forward.1} parent=0 // loop_body
    %s14 = ssub.s32 %s9, 1
    %s15 = ssub.s32 %s9, 2
    %s16 = sadd.s32 %s9, 1
    %s17 = ssub.s32 %s9, %s16
    %p18 = scmp.eq.s32.totalorder %s17, 0
    %s20 = sadd.s32 %s19, 1
    %s21 = scalar_select %p18, %s19, %s20
    %p24 = pneg %p18
    %p25 = scmp.eq.s32.totalorder %s9, 1
    %p26 = por %p24, %p25
    %p27 = scmp.ne.s32.totalorder %s19, %s22
    %p28 = scmp.eq.s32.totalorder %s9, 0
    %p29 = por %p27, %p28
    %p30 = scmp.ne.s32.totalorder %s19, %s22
    %p31 = scmp.eq.s32.totalorder %s14, 1
    %p32 = por %p30, %p31
    %p33 = scmp.ne.s32.totalorder %s22, %s23
    %p34 = scmp.eq.s32.totalorder %s14, 0
    %p35 = por %p33, %p34
    %p36 = scmp.ne.s32.totalorder %s22, %s23
    %p37 = scmp.eq.s32.totalorder %s15, 1
    %p38 = por %p36, %p37
    %p40 = scmp.ne.s32.totalorder %s23, %s39
    %p41 = scmp.eq.s32.totalorder %s15, 0
    %p42 = por %p40, %p41
    %s44 = sadd.s32 %s43, 1
    %p47 = scmp.eq.s32.totalorder %s9, 1
    %p48 = scmp.ne.s32.totalorder %s43, %s45
    %p49 = scmp.eq.s32.totalorder %s9, 0
    %p50 = por %p48, %p49
    %p51 = scmp.ne.s32.totalorder %s43, %s45
    %p52 = scmp.eq.s32.totalorder %s14, 1
    %p53 = por %p51, %p52
    %p54 = scmp.ne.s32.totalorder %s45, %s46
    %p55 = scmp.eq.s32.totalorder %s14, 0
    %p56 = por %p54, %p55
    %p57 = scmp.ne.s32.totalorder %s45, %s46
    %p58 = scmp.eq.s32.totalorder %s15, 1
    %p59 = por %p57, %p58
    %p61 = scmp.ne.s32.totalorder %s46, %s60
    %p62 = scmp.eq.s32.totalorder %s15, 0
    %p63 = por %p61, %p62
    %s65 = sadd.s32 %s64, 1
    %p68 = scmp.eq.s32.totalorder %s9, 1
    %p69 = scmp.ne.s32.totalorder %s64, %s66
    %p70 = scmp.eq.s32.totalorder %s9, 0
    %p71 = por %p69, %p70
    %p72 = scmp.ne.s32.totalorder %s64, %s66
    %p73 = scmp.eq.s32.totalorder %s14, 1
    %p74 = por %p72, %p73
    %p75 = scmp.ne.s32.totalorder %s66, %s67
    %p76 = scmp.eq.s32.totalorder %s14, 0
    %p77 = por %p75, %p76
    %p78 = scmp.ne.s32.totalorder %s66, %s67
    %p79 = scmp.eq.s32.totalorder %s15, 1
    %p80 = por %p78, %p79
    %p82 = scmp.ne.s32.totalorder %s67, %s81
    %p83 = scmp.eq.s32.totalorder %s15, 0
    %p84 = por %p82, %p83
    %s85 = ssub.s32 %s9, %s16
    %p86 = scmp.eq.s32.totalorder %s85, 0
    %s88 = sadd.s32 %s87, 1
    %s89 = scalar_select %p86, %s87, %s88
    %p92 = pneg %p86
    %p93 = scmp.eq.s32.totalorder %s9, 1
    %p94 = por %p92, %p93
    %p95 = scmp.ne.s32.totalorder %s87, %s90
    %p96 = scmp.eq.s32.totalorder %s9, 0
    %p97 = por %p95, %p96
    %p98 = scmp.ne.s32.totalorder %s87, %s90
    %p99 = scmp.eq.s32.totalorder %s14, 1
    %p100 = por %p98, %p99
    %p101 = scmp.ne.s32.totalorder %s90, %s91
    %p102 = scmp.eq.s32.totalorder %s14, 0
    %p103 = por %p101, %p102
    %p104 = scmp.ne.s32.totalorder %s90, %s91
    %p105 = scmp.eq.s32.totalorder %s15, 1
    %p106 = por %p104, %p105
    %p108 = scmp.ne.s32.totalorder %s91, %s107
    %p109 = scmp.eq.s32.totalorder %s15, 0
    %p110 = por %p108, %p109
    %p111 = scmp.le.s32.totalorder 1, %s9
    %p112 = scmp.lt.s32.totalorder %s9, 3
    %p113 = pnand %p111, %p112
    %p114 = pneg %p113
    // Predicated region
    $region9: #{video_wrapper_forward.1} parent=5 // pred_check
      _
    $region10: #{video_wrapper_forward.1} parent=5 // pred_check_branch
      %116 = sbr.rel (%p113) target = $region12
    $region11: #{video_wrapper_forward.1} parent=5 // pred_region
      %s117 = ssub.s32 %s9, 1
      // Predicated region
      $region13: #{video_wrapper_forward.1} parent=11 // pred_check
        %p118 = pneg %p56
      $region14: #{video_wrapper_forward.1} parent=11 // pred_check_branch
        %120 = sbr.rel (%p118) target = $region16
      $region15: #{video_wrapper_forward.1} parent=11 // pred_region
        _
      $region16: #{video_wrapper_forward.1} parent=11 // pred_fallthru
        _
      // Predicated region
      $region17: #{video_wrapper_forward.1} parent=11 // pred_check
        %p121 = pneg %p77
      $region18: #{video_wrapper_forward.1} parent=11 // pred_check_branch
        %123 = sbr.rel (%p121) target = $region20
      $region19: #{video_wrapper_forward.1} parent=11 // pred_region
        _
      $region20: #{video_wrapper_forward.1} parent=11 // pred_fallthru
        _
    $region12: #{video_wrapper_forward.1} parent=5 // pred_fallthru
      _
    %p124 = scmp.lt.s32.totalorder %s9, 2
    // Predicated region
    $region21: #{video_wrapper_forward.1} parent=5 // pred_check
      %p125 = pneg %p124
    $region22: #{video_wrapper_forward.1} parent=5 // pred_check_branch
      %127 = sbr.rel (%p125) target = $region24
    $region23: #{video_wrapper_forward.1} parent=5 // pred_region
      // Predicated region
      $region25: #{video_wrapper_forward.1} parent=23 // pred_check
        %p128 = pneg %p29
      $region26: #{video_wrapper_forward.1} parent=23 // pred_check_branch
        %130 = sbr.rel (%p128) target = $region28
      $region27: #{video_wrapper_forward.1} parent=23 // pred_region
        %s131 = smul.u32 4, %s9
        %p132 = scmp.lt.s32.totalorder %s131, 7
        %s133 = scalar_select %p132, %s131, 7
        %s134 = smul.addr %s133, 2
        %s135 = smul.addr %s134, 4
        %s136 = scalar_lea.vmem %s0, %s135
        %s137 = smul.u32 4, %s9
      $region28: #{video_wrapper_forward.1} parent=23 // pred_fallthru
        _
    $region24: #{video_wrapper_forward.1} parent=5 // pred_fallthru
      _
    %p138 = scmp.le.s32.totalorder 1, %s9
    %p139 = scmp.lt.s32.totalorder %s9, 3
    %p140 = pnand %p138, %p139
    %p141 = pneg %p140
    // Predicated region
    $region29: #{video_wrapper_forward.1} parent=5 // pred_check
      _
    $region30: #{video_wrapper_forward.1} parent=5 // pred_check_branch
      %143 = sbr.rel (%p140) target = $region32
    $region31: #{video_wrapper_forward.1} parent=5 // pred_region
      %s144 = ssub.s32 %s9, 1
      %s145 = smul.u32 4, %s14
      %p146 = scmp.lt.s32.totalorder %s145, 7
      %s147 = scalar_select %p146, %s145, 7
      %s148 = smul.addr %s147, 2
      %s149 = smul.addr %s148, 4
      %s150 = scalar_lea.vmem %s0, %s149
      %p151 = pneg %p35
      %p152 = pneg %p32
      %p153 = pneg %p56
      %p154 = pneg %p53
      %p155 = pneg %p77
      %p156 = pneg %p74
      %p157 = pneg %p103
      %p158 = pneg %p100
      %s159 = smul.u32 4, %s14
      %p160 = scmp.lt.s32.totalorder %s159, 7
      %s161 = scalar_select %p160, %s159, 7
      %s162 = smul.addr %s161, 2
      %s163 = smul.addr %s162, 8
      %s164 = scalar_lea.vmem %s3, %s163
      %s165 = smul.u32 4, %s14
      %p166 = scmp.lt.s32.totalorder %s165, 7
      %s167 = scalar_select %p166, %s165, 7
      %s168 = smul.addr %s167, 2
      %s169 = smul.addr %s168, 4
      %s170 = scalar_lea.vmem %s0, %s169
      %s171 = smul.u32 4, %s14
      %s172 = smul.u32 4, %s14
      %p173 = scmp.lt.s32.totalorder %s172, 7
      %s174 = scalar_select %p173, %s172, 7
      %s175 = smul.addr %s174, 2
      %s176 = smul.addr %s175, 8
      %s177 = scalar_lea.vmem %s3, %s176
      %s178 = smul.u32 4, %s14
      %v179 = vlaneseq
      %v180 = vand.u32 %v179, 127
      %v181 = vadd.s32 %v180, 128
      %vm182 = vcmp.lt.s32.totalorder %v180, 0
      %v183 = vsub.s32 0, %v180
      %v184 = vsel %vm182, %v183, %v180
      %v185 = vshrl.u32 %v184, 4
      %v186 = vand.u32 %v184, 15
      %v187 = vsub.s32 0, %v186
      %v188 = vsel %vm182, %v187, %v186
      %vm189 = vcmp.lt.s32.totalorder %v181, 0
      %v190 = vsub.s32 0, %v181
      %v191 = vsel %vm189, %v190, %v181
      %v192 = vshrl.u32 %v191, 4
      %v193 = vand.u32 %v191, 15
      %v194 = vsub.s32 0, %v193
      %v195 = vsel %vm189, %v194, %v193
      %vm196 = vcmp.ne.s32.totalorder %v188, 0
      %vm197 = vcmp.ne.s32.totalorder %v195, 0
      %vm198 = vcmp.lt.s32.totalorder %v188, 0
      %vm199 = vcmp.lt.s32.totalorder %v195, 0
      %vm200 = vmand %vm198, %vm196
      %vm201 = vmand %vm199, %vm197
      %v202 = vadd.s32 %v188, 16
      %v203 = vadd.s32 %v195, 16
      %v204 = vsel %vm200, %v202, %v188
      %v205 = vsel %vm201, %v203, %v195
      %vm206 = vcmp.ge.s32.totalorder %v204, 1
      %vm207 = vcmp.ge.s32.totalorder %v205, 1
      %vm208 = vcmp.le.s32.totalorder %v204, 14
      %vm209 = vcmp.le.s32.totalorder %v205, 14
      %v210 = vld [vmem:[%s1] sm:$0xff]
      %v211 = vld [vmem:[%s2] sm:$0xff]
      %v212 = vld [vmem:[%s170] sm:$0xff]
      %v214 = vcombine.high %v212, %v212
      %215 = vrot.lane.b32.xlu0 %v212, 17
      %v216 = vpop.permute.xlu0 %215
      %217 = vrot.lane.b32.xlu0 %v214, 17
      %v218 = vpop.permute.xlu0 %217
      %vm219 = vcmask 138240
      %v220 = vsel %vm219, %v216, %v218
      %v223 = vsel %vm219, 0.0, %v216
      %v224 = vsel %vm206, %v223, 0.0
      %v225 = vsel %vm207, %v220, 0.0
      %226 = vst [vmem:[#allocation2] sm:$0xf] %v224
      %227 = vst [vmem:[#allocation2 + $0x8] sm:$0xf] %v225
      %228 = vrot.lane.b32.xlu0 %v212, 16
      %v229 = vpop.permute.xlu0 %228
      %230 = vrot.lane.b32.xlu0 %v214, 16
      %v231 = vpop.permute.xlu0 %230
      %vm232 = vcmask 130048
      %v233 = vsel %vm232, %v229, %v231
      %v235 = vsel %vm232, 0.0, %v229
      %v237 = vrot.slane %v235, 4
      %v238 = vrot.slane %v233, 4
      %241 = vst [vmem:[#allocation2] sm:$0xf0] %v237
      %242 = vst [vmem:[#allocation2 + $0x8] sm:$0xf0] %v238
      %243 = vrot.lane.b32.xlu0 %v212, 15
      %v244 = vpop.permute.xlu0 %243
      %245 = vrot.lane.b32.xlu0 %v214, 15
      %v246 = vpop.permute.xlu0 %245
      %vm247 = vcmask 121856
      %v248 = vsel %vm247, %v244, %v246
      %v251 = vsel %vm247, 0.0, %v244
      %v252 = vsel %vm208, %v251, 0.0
      %v253 = vsel %vm209, %v248, 0.0
      %254 = vst [vmem:[#allocation2 + $0x10] sm:$0xf] %v252
      %255 = vst [vmem:[#allocation2 + $0x18] sm:$0xf] %v253
      %256 = vrot.lane.b32.xlu0 %v212, 1
      %v257 = vpop.permute.xlu0 %256
      %258 = vrot.lane.b32.xlu0 %v214, 1
      %v259 = vpop.permute.xlu0 %258
      %vm260 = vcmask 7168
      %v261 = vsel %vm260, %v257, %v259
      %v264 = vsel %vm260, 0.0, %v257
      %v265 = vsel %vm206, %v264, 0.0
      %v266 = vsel %vm207, %v261, 0.0
      %v269 = vrot.slane %v265, 4
      %v270 = vrot.slane %v266, 4
      %273 = vst [vmem:[#allocation2 + $0x10] sm:$0xf0] %v269
      %274 = vst [vmem:[#allocation2 + $0x18] sm:$0xf0] %v270
      %276 = vst [vmem:[#allocation2 + $0x20] sm:$0xf] %v212
      %277 = vst [vmem:[#allocation2 + $0x28] sm:$0xf] %v214
      %278 = vrot.lane.b32.xlu0 %v212, 127
      %v279 = vpop.permute.xlu0 %278
      %280 = vrot.lane.b32.xlu0 %v214, 127
      %v281 = vpop.permute.xlu0 %280
      %vm282 = vcmask 1039360
      %v283 = vsel %vm282, %v279, %v281
      %v286 = vsel %vm282, %v281, 0.0
      %v287 = vsel %vm208, %v283, 0.0
      %v288 = vsel %vm209, %v286, 0.0
      %v291 = vrot.slane %v287, 4
      %v292 = vrot.slane %v288, 4
      %295 = vst [vmem:[#allocation2 + $0x20] sm:$0xf0] %v291
      %296 = vst [vmem:[#allocation2 + $0x28] sm:$0xf0] %v292
      %297 = vrot.lane.b32.xlu0 %v212, 113
      %v298 = vpop.permute.xlu0 %297
      %299 = vrot.lane.b32.xlu0 %v214, 113
      %v300 = vpop.permute.xlu0 %299
      %vm301 = vcmask 924672
      %v302 = vsel %vm301, %v298, %v300
      %v305 = vsel %vm301, %v300, 0.0
      %v306 = vsel %vm206, %v302, 0.0
      %v307 = vsel %vm207, %v305, 0.0
      %308 = vst [vmem:[#allocation2 + $0x30] sm:$0xf] %v306
      %309 = vst [vmem:[#allocation2 + $0x38] sm:$0xf] %v307
      %310 = vrot.lane.b32.xlu0 %v212, 112
      %v311 = vpop.permute.xlu0 %310
      %312 = vrot.lane.b32.xlu0 %v214, 112
      %v313 = vpop.permute.xlu0 %312
      %vm314 = vcmask 916480
      %v315 = vsel %vm314, %v311, %v313
      %v317 = vsel %vm314, %v313, 0.0
      %v319 = vrot.slane %v315, 4
      %v320 = vrot.slane %v317, 4
      %323 = vst [vmem:[#allocation2 + $0x30] sm:$0xf0] %v319
      %324 = vst [vmem:[#allocation2 + $0x38] sm:$0xf0] %v320
      %325 = vrot.lane.b32.xlu0 %v212, 111
      %v326 = vpop.permute.xlu0 %325
      %327 = vrot.lane.b32.xlu0 %v214, 111
      %v328 = vpop.permute.xlu0 %327
      %vm329 = vcmask 908288
      %v330 = vsel %vm329, %v326, %v328
      %v333 = vsel %vm329, %v328, 0.0
      %v334 = vsel %vm208, %v330, 0.0
      %v335 = vsel %vm209, %v333, 0.0
      %336 = vst [vmem:[#allocation2 + $0x40] sm:$0xf] %v334
      %337 = vst [vmem:[#allocation2 + $0x48] sm:$0xf] %v335
      %v338 = vld [vmem:[#allocation2] sm:$0xff]
      %v339 = vld [vmem:[#allocation2 + $0x8] sm:$0xff]
      %v340 = vld [vmem:[#allocation2 + $0x10] sm:$0xff]
      %v341 = vld [vmem:[#allocation2 + $0x18] sm:$0xff]
      %v342 = vld [vmem:[#allocation2 + $0x20] sm:$0xff]
      %v343 = vld [vmem:[#allocation2 + $0x28] sm:$0xff]
      %v344 = vld [vmem:[#allocation2 + $0x30] sm:$0xff]
      %v345 = vld [vmem:[#allocation2 + $0x38] sm:$0xff]
      %v346 = vld [vmem:[#allocation2 + $0x40] sm:$0xf]
      %v347 = vld [vmem:[#allocation2 + $0x48] sm:$0xf]
      %349 = vset.pattern.permute.xlu0 0
      %350 = vperm.xlu0 %349, %v211
      %v351 = vpop.permute.xlu0 %350
      %vm353 = vcmask 293888
      %v355 = vsel %vm353, %v210, 0
      %vm357 = vcmask 1043456
      %v359 = vsel %vm357, %v346, 0
      %v362 = vsel %vm357, %v347, 0
      %364 = vmatprep.subr.mxu0 %v339
      %365 = vmatpush1.msra.mxu0 %v338
      %366 = vmatprep.subr.mxu0 %v341
      %367 = vmatpush1.msra.mxu0 %v340
      %368 = vmatprep.subr.mxu0 %v343
      %369 = vmatpush1.msra.mxu0 %v342
      %370 = vmatprep.subr.mxu0 %v345
      %371 = vmatpush1.msra.mxu0 %v344
      %372 = vmatprep.subr.mxu0 %v362
      %373 = vmatpush1.msra.mxu0 %v359
      %374 = vmatprep.subr.mxu0 0.0
      %375 = vmatpush1.msra.mxu0 0.0
      %376 = vmatprep.subr.mxu0 0.0
      %377 = vmatpush1.msra.mxu0 0.0
      %378 = vmatprep.subr.mxu0 0.0
      %379 = vmatpush1.msra.mxu0 0.0
      %380 = vmatprep.subr.mxu0 0.0
      %381 = vmatpush1.msra.mxu0 0.0
      %382 = vmatprep.subr.mxu0 0.0
      %383 = vmatpush1.msra.mxu0 0.0
      %384 = vmatprep.subr.mxu0 0.0
      %385 = vmatpush1.msra.mxu0 0.0
      %386 = vmatprep.subr.mxu0 0.0
      %387 = vmatpush1.msra.mxu0 0.0
      %388 = vmatprep.subr.mxu0 0.0
      %389 = vmatpush1.msra.mxu0 0.0
      %390 = vmatprep.subr.mxu0 0.0
      %391 = vmatpush1.msra.mxu0 0.0
      %392 = vmatprep.subr.mxu0 0.0
      %393 = vmatpush1.msra.mxu0 0.0
      %394 = vmatprep.subr.mxu0 0.0
      %395 = vmatpush1.msra.mxu0 0.0
      %396 = vmatprep.subr.mxu0 0.0
      %397 = vmatpush1.msra.mxu0 0.0
      %398 = vmatprep.subr.mxu0 0.0
      %399 = vmatpush1.msra.mxu0 0.0
      %400 = vmatprep.subr.mxu0 0.0
      %401 = vmatpush1.msra.mxu0 0.0
      %402 = vmatprep.subr.mxu0 0.0
      %403 = vmatpush1.msra.mxu0 0.0
      %404 = vmatprep.subr.mxu0 0.0
      %405 = vmatpush1.msra.mxu0 0.0
      %406 = vmatprep.subr.mxu0 0.0
      %407 = vmatpush1.msra.mxu0 0.0
      %408 = vmatprep.subr.mxu0 0.0
      %409 = vmatpush1.msra.mxu0 0.0
      %410 = vmatprep.subr.mxu0 0.0
      %411 = vmatpush1.msra.mxu0 0.0
      %412 = vmatprep.subr.mxu0 0.0
      %413 = vmatpush1.msra.mxu0 0.0
      %414 = vmatprep.subr.mxu0 0.0
      %415 = vmatpush1.msra.mxu0 0.0
      %416 = vmatprep.subr.mxu0 0.0
      %417 = vmatpush1.msra.mxu0 0.0
      %418 = vmatprep.subr.mxu0 0.0
      %419 = vmatpush1.msra.mxu0 0.0
      %420 = vmatprep.subr.mxu0 0.0
      %421 = vmatpush1.msra.mxu0 0.0
      %422 = vmatprep.subr.mxu0 0.0
      %423 = vmatpush1.msra.mxu0 0.0
      %424 = vmatprep.subr.mxu0 0.0
      %425 = vmatpush1.msra.mxu0 0.0
      %426 = vmatprep.subr.mxu0 0.0
      %427 = vmatpush1.msra.mxu0 0.0
      %428 = vmatprep.mubr.f32.mxu0 0.0
      %429 = vmatmul.mubr.f32.gmra.mrb[0].mxu0 %v355
      %v430 = vpop.f32.mrb[0].mxu0
      %v431 = vadd.f32 %v351, %v430
      %v432 = vpop.f32.mrb[0].mxu0
      %v433 = vadd.f32 %v351, %v432
      %434 = vdwg.mxu0
      %435 = vst [vmem:[%s177] sm:$0xff] %v431
      %436 = vst [vmem:[%s177 + $0x8] sm:$0xff] %v433
      %s437 = scalar_lea.vmem %s170, 8
      %v438 = vld [vmem:[%s437] sm:$0xff]
      %v440 = vcombine.high %v438, %v438
      %441 = vrot.lane.b32.xlu0 %v438, 17
      %v442 = vpop.permute.xlu0 %441
      %443 = vrot.lane.b32.xlu0 %v440, 17
      %v444 = vpop.permute.xlu0 %443
      %v445 = vsel %vm219, %v442, %v444
      %v448 = vsel %vm219, 0.0, %v442
      %v449 = vsel %vm206, %v448, 0.0
      %v450 = vsel %vm207, %v445, 0.0
      %451 = vst [vmem:[#allocation2] sm:$0xf] %v449
      %452 = vst [vmem:[#allocation2 + $0x8] sm:$0xf] %v450
      %453 = vrot.lane.b32.xlu0 %v438, 16
      %v454 = vpop.permute.xlu0 %453
      %455 = vrot.lane.b32.xlu0 %v440, 16
      %v456 = vpop.permute.xlu0 %455
      %v457 = vsel %vm232, %v454, %v456
      %v459 = vsel %vm232, 0.0, %v454
      %v461 = vrot.slane %v459, 4
      %v462 = vrot.slane %v457, 4
      %465 = vst [vmem:[#allocation2] sm:$0xf0] %v461
      %466 = vst [vmem:[#allocation2 + $0x8] sm:$0xf0] %v462
      %467 = vrot.lane.b32.xlu0 %v438, 15
      %v468 = vpop.permute.xlu0 %467
      %469 = vrot.lane.b32.xlu0 %v440, 15
      %v470 = vpop.permute.xlu0 %469
      %v471 = vsel %vm247, %v468, %v470
      %v474 = vsel %vm247, 0.0, %v468
      %v475 = vsel %vm208, %v474, 0.0
      %v476 = vsel %vm209, %v471, 0.0
      %477 = vst [vmem:[#allocation2 + $0x10] sm:$0xf] %v475
      %478 = vst [vmem:[#allocation2 + $0x18] sm:$0xf] %v476
      %479 = vrot.lane.b32.xlu0 %v438, 1
      %v480 = vpop.permute.xlu0 %479
      %481 = vrot.lane.b32.xlu0 %v440, 1
      %v482 = vpop.permute.xlu0 %481
      %v483 = vsel %vm260, %v480, %v482
      %v486 = vsel %vm260, 0.0, %v480
      %v487 = vsel %vm206, %v486, 0.0
      %v488 = vsel %vm207, %v483, 0.0
      %v491 = vrot.slane %v487, 4
      %v492 = vrot.slane %v488, 4
      %495 = vst [vmem:[#allocation2 + $0x10] sm:$0xf0] %v491
      %496 = vst [vmem:[#allocation2 + $0x18] sm:$0xf0] %v492
      %498 = vst [vmem:[#allocation2 + $0x20] sm:$0xf] %v438
      %499 = vst [vmem:[#allocation2 + $0x28] sm:$0xf] %v440
      %500 = vrot.lane.b32.xlu0 %v438, 127
      %v501 = vpop.permute.xlu0 %500
      %502 = vrot.lane.b32.xlu0 %v440, 127
      %v503 = vpop.permute.xlu0 %502
      %v504 = vsel %vm282, %v501, %v503
      %v507 = vsel %vm282, %v503, 0.0
      %v508 = vsel %vm208, %v504, 0.0
      %v509 = vsel %vm209, %v507, 0.0
      %v512 = vrot.slane %v508, 4
      %v513 = vrot.slane %v509, 4
      %516 = vst [vmem:[#allocation2 + $0x20] sm:$0xf0] %v512
      %517 = vst [vmem:[#allocation2 + $0x28] sm:$0xf0] %v513
      %518 = vrot.lane.b32.xlu0 %v438, 113
      %v519 = vpop.permute.xlu0 %518
      %520 = vrot.lane.b32.xlu0 %v440, 113
      %v521 = vpop.permute.xlu0 %520
      %v522 = vsel %vm301, %v519, %v521
      %v525 = vsel %vm301, %v521, 0.0
      %v526 = vsel %vm206, %v522, 0.0
      %v527 = vsel %vm207, %v525, 0.0
      %528 = vst [vmem:[#allocation2 + $0x30] sm:$0xf] %v526
      %529 = vst [vmem:[#allocation2 + $0x38] sm:$0xf] %v527
      %530 = vrot.lane.b32.xlu0 %v438, 112
      %v531 = vpop.permute.xlu0 %530
      %532 = vrot.lane.b32.xlu0 %v440, 112
      %v533 = vpop.permute.xlu0 %532
      %v534 = vsel %vm314, %v531, %v533
      %v536 = vsel %vm314, %v533, 0.0
      %v538 = vrot.slane %v534, 4
      %v539 = vrot.slane %v536, 4
      %542 = vst [vmem:[#allocation2 + $0x30] sm:$0xf0] %v538
      %543 = vst [vmem:[#allocation2 + $0x38] sm:$0xf0] %v539
      %544 = vrot.lane.b32.xlu0 %v438, 111
      %v545 = vpop.permute.xlu0 %544
      %546 = vrot.lane.b32.xlu0 %v440, 111
      %v547 = vpop.permute.xlu0 %546
      %v548 = vsel %vm329, %v545, %v547
      %v551 = vsel %vm329, %v547, 0.0
      %v552 = vsel %vm208, %v548, 0.0
      %v553 = vsel %vm209, %v551, 0.0
      %554 = vst [vmem:[#allocation2 + $0x40] sm:$0xf] %v552
      %555 = vst [vmem:[#allocation2 + $0x48] sm:$0xf] %v553
      %v556 = vld [vmem:[#allocation2] sm:$0xff]
      %v557 = vld [vmem:[#allocation2 + $0x8] sm:$0xff]
      %v558 = vld [vmem:[#allocation2 + $0x10] sm:$0xff]
      %v559 = vld [vmem:[#allocation2 + $0x18] sm:$0xff]
      %v560 = vld [vmem:[#allocation2 + $0x20] sm:$0xff]
      %v561 = vld [vmem:[#allocation2 + $0x28] sm:$0xff]
      %v562 = vld [vmem:[#allocation2 + $0x30] sm:$0xff]
      %v563 = vld [vmem:[#allocation2 + $0x38] sm:$0xff]
      %v564 = vld [vmem:[#allocation2 + $0x40] sm:$0xf]
      %v565 = vld [vmem:[#allocation2 + $0x48] sm:$0xf]
      %v567 = vsel %vm357, %v564, 0
      %v570 = vsel %vm357, %v565, 0
      %572 = vmatprep.subr.mxu0 %v557
      %573 = vmatpush1.msra.mxu0 %v556
      %574 = vmatprep.subr.mxu0 %v559
      %575 = vmatpush1.msra.mxu0 %v558
      %576 = vmatprep.subr.mxu0 %v561
      %577 = vmatpush1.msra.mxu0 %v560
      %578 = vmatprep.subr.mxu0 %v563
      %579 = vmatpush1.msra.mxu0 %v562
      %580 = vmatprep.subr.mxu0 %v570
      %581 = vmatpush1.msra.mxu0 %v567
      %582 = vmatprep.subr.mxu0 0.0
      %583 = vmatpush1.msra.mxu0 0.0
      %584 = vmatprep.subr.mxu0 0.0
      %585 = vmatpush1.msra.mxu0 0.0
      %586 = vmatprep.subr.mxu0 0.0
      %587 = vmatpush1.msra.mxu0 0.0
      %588 = vmatprep.subr.mxu0 0.0
      %589 = vmatpush1.msra.mxu0 0.0
      %590 = vmatprep.subr.mxu0 0.0
      %591 = vmatpush1.msra.mxu0 0.0
      %592 = vmatprep.subr.mxu0 0.0
      %593 = vmatpush1.msra.mxu0 0.0
      %594 = vmatprep.subr.mxu0 0.0
      %595 = vmatpush1.msra.mxu0 0.0
      %596 = vmatprep.subr.mxu0 0.0
      %597 = vmatpush1.msra.mxu0 0.0
      %598 = vmatprep.subr.mxu0 0.0
      %599 = vmatpush1.msra.mxu0 0.0
      %600 = vmatprep.subr.mxu0 0.0
      %601 = vmatpush1.msra.mxu0 0.0
      %602 = vmatprep.subr.mxu0 0.0
      %603 = vmatpush1.msra.mxu0 0.0
      %604 = vmatprep.subr.mxu0 0.0
      %605 = vmatpush1.msra.mxu0 0.0
      %606 = vmatprep.subr.mxu0 0.0
      %607 = vmatpush1.msra.mxu0 0.0
      %608 = vmatprep.subr.mxu0 0.0
      %609 = vmatpush1.msra.mxu0 0.0
      %610 = vmatprep.subr.mxu0 0.0
      %611 = vmatpush1.msra.mxu0 0.0
      %612 = vmatprep.subr.mxu0 0.0
      %613 = vmatpush1.msra.mxu0 0.0
      %614 = vmatprep.subr.mxu0 0.0
      %615 = vmatpush1.msra.mxu0 0.0
      %616 = vmatprep.subr.mxu0 0.0
      %617 = vmatpush1.msra.mxu0 0.0
      %618 = vmatprep.subr.mxu0 0.0
      %619 = vmatpush1.msra.mxu0 0.0
      %620 = vmatprep.subr.mxu0 0.0
      %621 = vmatpush1.msra.mxu0 0.0
      %622 = vmatprep.subr.mxu0 0.0
      %623 = vmatpush1.msra.mxu0 0.0
      %624 = vmatprep.subr.mxu0 0.0
      %625 = vmatpush1.msra.mxu0 0.0
      %626 = vmatprep.subr.mxu0 0.0
      %627 = vmatpush1.msra.mxu0 0.0
      %628 = vmatprep.subr.mxu0 0.0
      %629 = vmatpush1.msra.mxu0 0.0
      %630 = vmatprep.subr.mxu0 0.0
      %631 = vmatpush1.msra.mxu0 0.0
      %632 = vmatprep.subr.mxu0 0.0
      %633 = vmatpush1.msra.mxu0 0.0
      %634 = vmatprep.subr.mxu0 0.0
      %635 = vmatpush1.msra.mxu0 0.0
      %636 = vmatprep.mubr.f32.mxu0 0.0
      %637 = vmatmul.mubr.f32.gmra.mrb[0].mxu0 %v355
      %v638 = vpop.f32.mrb[0].mxu0
      %v639 = vadd.f32 %v351, %v638
      %v640 = vpop.f32.mrb[0].mxu0
      %v641 = vadd.f32 %v351, %v640
      %642 = vdwg.mxu0
      %s643 = scalar_lea.vmem %s177, 16
      %644 = vst [vmem:[%s643] sm:$0xff] %v639
      %645 = vst [vmem:[%s643 + $0x8] sm:$0xff] %v641
      %s646 = scalar_lea.vmem %s170, 16
      %v647 = vld [vmem:[%s646] sm:$0xff]
      %v649 = vcombine.high %v647, %v647
      %650 = vrot.lane.b32.xlu0 %v647, 17
      %v651 = vpop.permute.xlu0 %650
      %652 = vrot.lane.b32.xlu0 %v649, 17
      %v653 = vpop.permute.xlu0 %652
      %v654 = vsel %vm219, %v651, %v653
      %v657 = vsel %vm219, 0.0, %v651
      %v658 = vsel %vm206, %v657, 0.0
      %v659 = vsel %vm207, %v654, 0.0
      %660 = vst [vmem:[#allocation2] sm:$0xf] %v658
      %661 = vst [vmem:[#allocation2 + $0x8] sm:$0xf] %v659
      %662 = vrot.lane.b32.xlu0 %v647, 16
      %v663 = vpop.permute.xlu0 %662
      %664 = vrot.lane.b32.xlu0 %v649, 16
      %v665 = vpop.permute.xlu0 %664
      %v666 = vsel %vm232, %v663, %v665
      %v668 = vsel %vm232, 0.0, %v663
      %v670 = vrot.slane %v668, 4
      %v671 = vrot.slane %v666, 4
      %674 = vst [vmem:[#allocation2] sm:$0xf0] %v670
      %675 = vst [vmem:[#allocation2 + $0x8] sm:$0xf0] %v671
      %676 = vrot.lane.b32.xlu0 %v647, 15
      %v677 = vpop.permute.xlu0 %676
      %678 = vrot.lane.b32.xlu0 %v649, 15
      %v679 = vpop.permute.xlu0 %678
      %v680 = vsel %vm247, %v677, %v679
      %v683 = vsel %vm247, 0.0, %v677
      %v684 = vsel %vm208, %v683, 0.0
      %v685 = vsel %vm209, %v680, 0.0
      %686 = vst [vmem:[#allocation2 + $0x10] sm:$0xf] %v684
      %687 = vst [vmem:[#allocation2 + $0x18] sm:$0xf] %v685
      %688 = vrot.lane.b32.xlu0 %v647, 1
      %v689 = vpop.permute.xlu0 %688
      %690 = vrot.lane.b32.xlu0 %v649, 1
      %v691 = vpop.permute.xlu0 %690
      %v692 = vsel %vm260, %v689, %v691
      %v695 = vsel %vm260, 0.0, %v689
      %v696 = vsel %vm206, %v695, 0.0
      %v697 = vsel %vm207, %v692, 0.0
      %v700 = vrot.slane %v696, 4
      %v701 = vrot.slane %v697, 4
      %704 = vst [vmem:[#allocation2 + $0x10] sm:$0xf0] %v700
      %705 = vst [vmem:[#allocation2 + $0x18] sm:$0xf0] %v701
      %707 = vst [vmem:[#allocation2 + $0x20] sm:$0xf] %v647
      %708 = vst [vmem:[#allocation2 + $0x28] sm:$0xf] %v649
      %709 = vrot.lane.b32.xlu0 %v647, 127
      %v710 = vpop.permute.xlu0 %709
      %711 = vrot.lane.b32.xlu0 %v649, 127
      %v712 = vpop.permute.xlu0 %711
      %v713 = vsel %vm282, %v710, %v712
      %v716 = vsel %vm282, %v712, 0.0
      %v717 = vsel %vm208, %v713, 0.0
      %v718 = vsel %vm209, %v716, 0.0
      %v721 = vrot.slane %v717, 4
      %v722 = vrot.slane %v718, 4
      %725 = vst [vmem:[#allocation2 + $0x20] sm:$0xf0] %v721
      %726 = vst [vmem:[#allocation2 + $0x28] sm:$0xf0] %v722
      %727 = vrot.lane.b32.xlu0 %v647, 113
      %v728 = vpop.permute.xlu0 %727
      %729 = vrot.lane.b32.xlu0 %v649, 113
      %v730 = vpop.permute.xlu0 %729
      %v731 = vsel %vm301, %v728, %v730
      %v734 = vsel %vm301, %v730, 0.0
      %v735 = vsel %vm206, %v731, 0.0
      %v736 = vsel %vm207, %v734, 0.0
      %737 = vst [vmem:[#allocation2 + $0x30] sm:$0xf] %v735
      %738 = vst [vmem:[#allocation2 + $0x38] sm:$0xf] %v736
      %739 = vrot.lane.b32.xlu0 %v647, 112
      %v740 = vpop.permute.xlu0 %739
      %741 = vrot.lane.b32.xlu0 %v649, 112
      %v742 = vpop.permute.xlu0 %741
      %v743 = vsel %vm314, %v740, %v742
      %v745 = vsel %vm314, %v742, 0.0
      %v747 = vrot.slane %v743, 4
      %v748 = vrot.slane %v745, 4
      %751 = vst [vmem:[#allocation2 + $0x30] sm:$0xf0] %v747
      %752 = vst [vmem:[#allocation2 + $0x38] sm:$0xf0] %v748
      %753 = vrot.lane.b32.xlu0 %v647, 111
      %v754 = vpop.permute.xlu0 %753
      %755 = vrot.lane.b32.xlu0 %v649, 111
      %v756 = vpop.permute.xlu0 %755
      %v757 = vsel %vm329, %v754, %v756
      %v760 = vsel %vm329, %v756, 0.0
      %v761 = vsel %vm208, %v757, 0.0
      %v762 = vsel %vm209, %v760, 0.0
      %763 = vst [vmem:[#allocation2 + $0x40] sm:$0xf] %v761
      %764 = vst [vmem:[#allocation2 + $0x48] sm:$0xf] %v762
      %v765 = vld [vmem:[#allocation2] sm:$0xff]
      %v766 = vld [vmem:[#allocation2 + $0x8] sm:$0xff]
      %v767 = vld [vmem:[#allocation2 + $0x10] sm:$0xff]
      %v768 = vld [vmem:[#allocation2 + $0x18] sm:$0xff]
      %v769 = vld [vmem:[#allocation2 + $0x20] sm:$0xff]
      %v770 = vld [vmem:[#allocation2 + $0x28] sm:$0xff]
      %v771 = vld [vmem:[#allocation2 + $0x30] sm:$0xff]
      %v772 = vld [vmem:[#allocation2 + $0x38] sm:$0xff]
      %v773 = vld [vmem:[#allocation2 + $0x40] sm:$0xf]
      %v774 = vld [vmem:[#allocation2 + $0x48] sm:$0xf]
      %v776 = vsel %vm357, %v773, 0
      %v779 = vsel %vm357, %v774, 0
      %781 = vmatprep.subr.mxu0 %v766
      %782 = vmatpush1.msra.mxu0 %v765
      %783 = vmatprep.subr.mxu0 %v768
      %784 = vmatpush1.msra.mxu0 %v767
      %785 = vmatprep.subr.mxu0 %v770
      %786 = vmatpush1.msra.mxu0 %v769
      %787 = vmatprep.subr.mxu0 %v772
      %788 = vmatpush1.msra.mxu0 %v771
      %789 = vmatprep.subr.mxu0 %v779
      %790 = vmatpush1.msra.mxu0 %v776
      %791 = vmatprep.subr.mxu0 0.0
      %792 = vmatpush1.msra.mxu0 0.0
      %793 = vmatprep.subr.mxu0 0.0
      %794 = vmatpush1.msra.mxu0 0.0
      %795 = vmatprep.subr.mxu0 0.0
      %796 = vmatpush1.msra.mxu0 0.0
      %797 = vmatprep.subr.mxu0 0.0
      %798 = vmatpush1.msra.mxu0 0.0
      %799 = vmatprep.subr.mxu0 0.0
      %800 = vmatpush1.msra.mxu0 0.0
      %801 = vmatprep.subr.mxu0 0.0
      %802 = vmatpush1.msra.mxu0 0.0
      %803 = vmatprep.subr.mxu0 0.0
      %804 = vmatpush1.msra.mxu0 0.0
      %805 = vmatprep.subr.mxu0 0.0
      %806 = vmatpush1.msra.mxu0 0.0
      %807 = vmatprep.subr.mxu0 0.0
      %808 = vmatpush1.msra.mxu0 0.0
      %809 = vmatprep.subr.mxu0 0.0
      %810 = vmatpush1.msra.mxu0 0.0
      %811 = vmatprep.subr.mxu0 0.0
      %812 = vmatpush1.msra.mxu0 0.0
      %813 = vmatprep.subr.mxu0 0.0
      %814 = vmatpush1.msra.mxu0 0.0
      %815 = vmatprep.subr.mxu0 0.0
      %816 = vmatpush1.msra.mxu0 0.0
      %817 = vmatprep.subr.mxu0 0.0
      %818 = vmatpush1.msra.mxu0 0.0
      %819 = vmatprep.subr.mxu0 0.0
      %820 = vmatpush1.msra.mxu0 0.0
      %821 = vmatprep.subr.mxu0 0.0
      %822 = vmatpush1.msra.mxu0 0.0
      %823 = vmatprep.subr.mxu0 0.0
      %824 = vmatpush1.msra.mxu0 0.0
      %825 = vmatprep.subr.mxu0 0.0
      %826 = vmatpush1.msra.mxu0 0.0
      %827 = vmatprep.subr.mxu0 0.0
      %828 = vmatpush1.msra.mxu0 0.0
      %829 = vmatprep.subr.mxu0 0.0
      %830 = vmatpush1.msra.mxu0 0.0
      %831 = vmatprep.subr.mxu0 0.0
      %832 = vmatpush1.msra.mxu0 0.0
      %833 = vmatprep.subr.mxu0 0.0
      %834 = vmatpush1.msra.mxu0 0.0
      %835 = vmatprep.subr.mxu0 0.0
      %836 = vmatpush1.msra.mxu0 0.0
      %837 = vmatprep.subr.mxu0 0.0
      %838 = vmatpush1.msra.mxu0 0.0
      %839 = vmatprep.subr.mxu0 0.0
      %840 = vmatpush1.msra.mxu0 0.0
      %841 = vmatprep.subr.mxu0 0.0
      %842 = vmatpush1.msra.mxu0 0.0
      %843 = vmatprep.subr.mxu0 0.0
      %844 = vmatpush1.msra.mxu0 0.0
      %845 = vmatprep.mubr.f32.mxu0 0.0
      %846 = vmatmul.mubr.f32.gmra.mrb[0].mxu0 %v355
      %v847 = vpop.f32.mrb[0].mxu0
      %v848 = vadd.f32 %v351, %v847
      %v849 = vpop.f32.mrb[0].mxu0
      %v850 = vadd.f32 %v351, %v849
      %851 = vdwg.mxu0
      %s852 = scalar_lea.vmem %s177, 32
      %853 = vst [vmem:[%s852] sm:$0xff] %v848
      %854 = vst [vmem:[%s852 + $0x8] sm:$0xff] %v850
      %s855 = scalar_lea.vmem %s170, 24
      %v856 = vld [vmem:[%s855] sm:$0xff]
      %v858 = vcombine.high %v856, %v856
      %859 = vrot.lane.b32.xlu0 %v856, 17
      %v860 = vpop.permute.xlu0 %859
      %861 = vrot.lane.b32.xlu0 %v858, 17
      %v862 = vpop.permute.xlu0 %861
      %v863 = vsel %vm219, %v860, %v862
      %v866 = vsel %vm219, 0.0, %v860
      %v867 = vsel %vm206, %v866, 0.0
      %v868 = vsel %vm207, %v863, 0.0
      %869 = vst [vmem:[#allocation2] sm:$0xf] %v867
      %870 = vst [vmem:[#allocation2 + $0x8] sm:$0xf] %v868
      %871 = vrot.lane.b32.xlu0 %v856, 16
      %v872 = vpop.permute.xlu0 %871
      %873 = vrot.lane.b32.xlu0 %v858, 16
      %v874 = vpop.permute.xlu0 %873
      %v875 = vsel %vm232, %v872, %v874
      %v877 = vsel %vm232, 0.0, %v872
      %v879 = vrot.slane %v877, 4
      %v880 = vrot.slane %v875, 4
      %883 = vst [vmem:[#allocation2] sm:$0xf0] %v879
      %884 = vst [vmem:[#allocation2 + $0x8] sm:$0xf0] %v880
      %885 = vrot.lane.b32.xlu0 %v856, 15
      %v886 = vpop.permute.xlu0 %885
      %887 = vrot.lane.b32.xlu0 %v858, 15
      %v888 = vpop.permute.xlu0 %887
      %v889 = vsel %vm247, %v886, %v888
      %v892 = vsel %vm247, 0.0, %v886
      %v893 = vsel %vm208, %v892, 0.0
      %v894 = vsel %vm209, %v889, 0.0
      %895 = vst [vmem:[#allocation2 + $0x10] sm:$0xf] %v893
      %896 = vst [vmem:[#allocation2 + $0x18] sm:$0xf] %v894
      %897 = vrot.lane.b32.xlu0 %v856, 1
      %v898 = vpop.permute.xlu0 %897
      %899 = vrot.lane.b32.xlu0 %v858, 1
      %v900 = vpop.permute.xlu0 %899
      %v901 = vsel %vm260, %v898, %v900
      %v904 = vsel %vm260, 0.0, %v898
      %v905 = vsel %vm206, %v904, 0.0
      %v906 = vsel %vm207, %v901, 0.0
      %v909 = vrot.slane %v905, 4
      %v910 = vrot.slane %v906, 4
      %913 = vst [vmem:[#allocation2 + $0x10] sm:$0xf0] %v909
      %914 = vst [vmem:[#allocation2 + $0x18] sm:$0xf0] %v910
      %916 = vst [vmem:[#allocation2 + $0x20] sm:$0xf] %v856
      %917 = vst [vmem:[#allocation2 + $0x28] sm:$0xf] %v858
      %918 = vrot.lane.b32.xlu0 %v856, 127
      %v919 = vpop.permute.xlu0 %918
      %920 = vrot.lane.b32.xlu0 %v858, 127
      %v921 = vpop.permute.xlu0 %920
      %v922 = vsel %vm282, %v919, %v921
      %v925 = vsel %vm282, %v921, 0.0
      %v926 = vsel %vm208, %v922, 0.0
      %v927 = vsel %vm209, %v925, 0.0
      %v930 = vrot.slane %v926, 4
      %v931 = vrot.slane %v927, 4
      %934 = vst [vmem:[#allocation2 + $0x20] sm:$0xf0] %v930
      %935 = vst [vmem:[#allocation2 + $0x28] sm:$0xf0] %v931
      %936 = vrot.lane.b32.xlu0 %v856, 113
      %v937 = vpop.permute.xlu0 %936
      %938 = vrot.lane.b32.xlu0 %v858, 113
      %v939 = vpop.permute.xlu0 %938
      %v940 = vsel %vm301, %v937, %v939
      %v943 = vsel %vm301, %v939, 0.0
      %v944 = vsel %vm206, %v940, 0.0
      %v945 = vsel %vm207, %v943, 0.0
      %946 = vst [vmem:[#allocation2 + $0x30] sm:$0xf] %v944
      %947 = vst [vmem:[#allocation2 + $0x38] sm:$0xf] %v945
      %948 = vrot.lane.b32.xlu0 %v856, 112
      %v949 = vpop.permute.xlu0 %948
      %950 = vrot.lane.b32.xlu0 %v858, 112
      %v951 = vpop.permute.xlu0 %950
      %v952 = vsel %vm314, %v949, %v951
      %v954 = vsel %vm314, %v951, 0.0
      %v956 = vrot.slane %v952, 4
      %v957 = vrot.slane %v954, 4
      %960 = vst [vmem:[#allocation2 + $0x30] sm:$0xf0] %v956
      %961 = vst [vmem:[#allocation2 + $0x38] sm:$0xf0] %v957
      %962 = vrot.lane.b32.xlu0 %v856, 111
      %v963 = vpop.permute.xlu0 %962
      %964 = vrot.lane.b32.xlu0 %v858, 111
      %v965 = vpop.permute.xlu0 %964
      %v966 = vsel %vm329, %v963, %v965
      %v969 = vsel %vm329, %v965, 0.0
      %v970 = vsel %vm208, %v966, 0.0
      %v971 = vsel %vm209, %v969, 0.0
      %972 = vst [vmem:[#allocation2 + $0x40] sm:$0xf] %v970
      %973 = vst [vmem:[#allocation2 + $0x48] sm:$0xf] %v971
      %v974 = vld [vmem:[#allocation2] sm:$0xff]
      %v975 = vld [vmem:[#allocation2 + $0x8] sm:$0xff]
      %v976 = vld [vmem:[#allocation2 + $0x10] sm:$0xff]
      %v977 = vld [vmem:[#allocation2 + $0x18] sm:$0xff]
      %v978 = vld [vmem:[#allocation2 + $0x20] sm:$0xff]
      %v979 = vld [vmem:[#allocation2 + $0x28] sm:$0xff]
      %v980 = vld [vmem:[#allocation2 + $0x30] sm:$0xff]
      %v981 = vld [vmem:[#allocation2 + $0x38] sm:$0xff]
      %v982 = vld [vmem:[#allocation2 + $0x40] sm:$0xf]
      %v983 = vld [vmem:[#allocation2 + $0x48] sm:$0xf]
      %v985 = vsel %vm357, %v982, 0
      %v988 = vsel %vm357, %v983, 0
      %990 = vmatprep.subr.mxu0 %v975
      %991 = vmatpush1.msra.mxu0 %v974
      %992 = vmatprep.subr.mxu0 %v977
      %993 = vmatpush1.msra.mxu0 %v976
      %994 = vmatprep.subr.mxu0 %v979
      %995 = vmatpush1.msra.mxu0 %v978
      %996 = vmatprep.subr.mxu0 %v981
      %997 = vmatpush1.msra.mxu0 %v980
      %998 = vmatprep.subr.mxu0 %v988
      %999 = vmatpush1.msra.mxu0 %v985
      %1000 = vmatprep.subr.mxu0 0.0
      %1001 = vmatpush1.msra.mxu0 0.0
      %1002 = vmatprep.subr.mxu0 0.0
      %1003 = vmatpush1.msra.mxu0 0.0
      %1004 = vmatprep.subr.mxu0 0.0
      %1005 = vmatpush1.msra.mxu0 0.0
      %1006 = vmatprep.subr.mxu0 0.0
      %1007 = vmatpush1.msra.mxu0 0.0
      %1008 = vmatprep.subr.mxu0 0.0
      %1009 = vmatpush1.msra.mxu0 0.0
      %1010 = vmatprep.subr.mxu0 0.0
      %1011 = vmatpush1.msra.mxu0 0.0
      %1012 = vmatprep.subr.mxu0 0.0
      %1013 = vmatpush1.msra.mxu0 0.0
      %1014 = vmatprep.subr.mxu0 0.0
      %1015 = vmatpush1.msra.mxu0 0.0
      %1016 = vmatprep.subr.mxu0 0.0
      %1017 = vmatpush1.msra.mxu0 0.0
      %1018 = vmatprep.subr.mxu0 0.0
      %1019 = vmatpush1.msra.mxu0 0.0
      %1020 = vmatprep.subr.mxu0 0.0
      %1021 = vmatpush1.msra.mxu0 0.0
      %1022 = vmatprep.subr.mxu0 0.0
      %1023 = vmatpush1.msra.mxu0 0.0
      %1024 = vmatprep.subr.mxu0 0.0
      %1025 = vmatpush1.msra.mxu0 0.0
      %1026 = vmatprep.subr.mxu0 0.0
      %1027 = vmatpush1.msra.mxu0 0.0
      %1028 = vmatprep.subr.mxu0 0.0
      %1029 = vmatpush1.msra.mxu0 0.0
      %1030 = vmatprep.subr.mxu0 0.0
      %1031 = vmatpush1.msra.mxu0 0.0
      %1032 = vmatprep.subr.mxu0 0.0
      %1033 = vmatpush1.msra.mxu0 0.0
      %1034 = vmatprep.subr.mxu0 0.0
      %1035 = vmatpush1.msra.mxu0 0.0
      %1036 = vmatprep.subr.mxu0 0.0
      %1037 = vmatpush1.msra.mxu0 0.0
      %1038 = vmatprep.subr.mxu0 0.0
      %1039 = vmatpush1.msra.mxu0 0.0
      %1040 = vmatprep.subr.mxu0 0.0
      %1041 = vmatpush1.msra.mxu0 0.0
      %1042 = vmatprep.subr.mxu0 0.0
      %1043 = vmatpush1.msra.mxu0 0.0
      %1044 = vmatprep.subr.mxu0 0.0
      %1045 = vmatpush1.msra.mxu0 0.0
      %1046 = vmatprep.subr.mxu0 0.0
      %1047 = vmatpush1.msra.mxu0 0.0
      %1048 = vmatprep.subr.mxu0 0.0
      %1049 = vmatpush1.msra.mxu0 0.0
      %1050 = vmatprep.subr.mxu0 0.0
      %1051 = vmatpush1.msra.mxu0 0.0
      %1052 = vmatprep.subr.mxu0 0.0
      %1053 = vmatpush1.msra.mxu0 0.0
      %1054 = vmatprep.mubr.f32.mxu0 0.0
      %1055 = vmatmul.mubr.f32.gmra.mrb[0].mxu0 %v355
      %v1056 = vpop.f32.mrb[0].mxu0
      %v1057 = vadd.f32 %v351, %v1056
      %v1058 = vpop.f32.mrb[0].mxu0
      %v1059 = vadd.f32 %v351, %v1058
      %1060 = vdwg.mxu0
      %s1061 = scalar_lea.vmem %s177, 48
      %1062 = vst [vmem:[%s1061] sm:$0xff] %v1057
      %1063 = vst [vmem:[%s1061 + $0x8] sm:$0xff] %v1059
      %s1064 = smul.u32 4, %s14
      %p1065 = scmp.lt.s32.totalorder %s1064, 7
      %s1066 = scalar_select %p1065, %s1064, 7
      %s1067 = smul.addr %s1066, 2
      %s1068 = smul.addr %s1067, 8
      %s1069 = scalar_lea.vmem %s3, %s1068
      // Predicated region
      $region33: #{video_wrapper_forward.1} parent=31 // pred_check
        %p1070 = pneg %p100
      $region34: #{video_wrapper_forward.1} parent=31 // pred_check_branch
        %1072 = sbr.rel (%p1070) target = $region36
      $region35: #{video_wrapper_forward.1} parent=31 // pred_region
        %s1073 = smul.u32 4, %s14
      $region36: #{video_wrapper_forward.1} parent=31 // pred_fallthru
        _
    $region32: #{video_wrapper_forward.1} parent=5 // pred_fallthru
      _
    %p1074 = scmp.le.s32.totalorder 2, %s9
    // Predicated region
    $region37: #{video_wrapper_forward.1} parent=5 // pred_check
      %p1075 = pneg %p1074
    $region38: #{video_wrapper_forward.1} parent=5 // pred_check_branch
      %1077 = sbr.rel (%p1075) target = $region40
    $region39: #{video_wrapper_forward.1} parent=5 // pred_region
      %s1078 = ssub.s32 %s9, 2
      // Predicated region
      $region41: #{video_wrapper_forward.1} parent=39 // pred_check
        %p1079 = pneg %p106
      $region42: #{video_wrapper_forward.1} parent=39 // pred_check_branch
        %1081 = sbr.rel (%p1079) target = $region44
      $region43: #{video_wrapper_forward.1} parent=39 // pred_region
        %s1082 = smul.u32 4, %s15
        %p1083 = scmp.lt.s32.totalorder %s1082, 7
        %s1084 = scalar_select %p1083, %s1082, 7
        %s1085 = smul.addr %s1084, 2
        %s1086 = smul.addr %s1085, 8
        %s1087 = scalar_lea.vmem %s3, %s1086
      $region44: #{video_wrapper_forward.1} parent=39 // pred_fallthru
        _
    $region40: #{video_wrapper_forward.1} parent=5 // pred_fallthru
      _
  $region6: #{video_wrapper_forward.1} parent=0 // loop_footer
    %s13 = sadd.s32 1, %s9
  $region7: #{video_wrapper_forward.1} parent=0 // loop_footer_branch
    %8 = sbr.rel target = $region3
  $region8: #{video_wrapper_forward.1} parent=0 // loop_exit
    _

</llo_original>
